<compile_context>
chip_gen: v6e
topology: v6e:2x2x1
jax: 0.10.0
libtpu: 0.0.40
codegen_flags: <defaults>
</compile_context>

<pallas_src>
import functools

import jax
import jax.numpy as jnp
from jax.experimental import pallas as pl
from jax.experimental.pallas import tpu as pltpu

BASE_FEAT = 1024
NEG_SLOPE = 0.01
BN_EPS = 1e-5


def _leaky_relu(x):
    return jnp.where(x > 0, x, NEG_SLOPE * x)


def _batchnorm1d_train(x, gamma, beta):
    # BatchNorm1d(num_features=1) over [B, 1, L]: stats over all B*L elements.
    # Single fused pass (sum + sum-of-squares); variance clamped at 0 to avoid
    # cancellation-induced NaN in rsqrt.
    n = x.shape[0] * x.shape[1]
    s = jnp.sum(x)
    ss = jnp.sum(x * x)
    mean = s / n
    var = jnp.maximum(ss / n - mean * mean, 0.0)
    scale = jax.lax.rsqrt(var + BN_EPS) * gamma
    return (x - mean) * scale + beta


def autoencoder1d_kernel(
    scal_ref,       # SMEM (5,) f32: [bn_e_gamma, bn_e_beta, bn_d_gamma, bn_d_beta, b_convT]
    x_ref,          # [B, D_pad]      bf16 input (zero-padded lanes, pre-cast in wrapper)
    wceT_ref,       # [D_pad, 1024]   encoder Conv2d weight, pre-transposed, bf16
    bce_ref,        # [1, 1024]       encoder Conv2d bias, f32
    wleT_ref,       # [1024, LAT_pad] encoder Linear weight, pre-transposed, padded, bf16
    ble_ref,        # [1, LAT_pad]    encoder Linear bias, padded, f32
    wldT_ref,       # [LAT_pad, 1024] decoder Linear weight, pre-transposed, padded, bf16
    bld_ref,        # [1, 1024]       decoder Linear bias, f32
    wct_ref,        # [1024, D_pad]   decoder ConvTranspose1d weight, padded, bf16
    latent_ref,     # out: [B, LAT_pad] f32 (lane-dense; wrapper slices to latent_dim)
    out_ref,        # out: [B, D_pad]   f32 (lane-dense; wrapper slices to D)
):
    # ---------------- Encoder ----------------
    # Conv2d(1, 1024, kernel=(1, D)) over the full width == dense matmul (bf16 MXU, f32 acc).
    h = jnp.dot(x_ref[...], wceT_ref[...],
                preferred_element_type=jnp.float32) + bce_ref[...]
    h = _leaky_relu(h)
    h = _batchnorm1d_train(h, scal_ref[0], scal_ref[1])
    lat = jnp.dot(h.astype(jnp.bfloat16), wleT_ref[...],
                  preferred_element_type=jnp.float32) + ble_ref[...]
    latent_ref[...] = lat.astype(latent_ref.dtype)

    # ---------------- Decoder ----------------
    d = jnp.dot(lat.astype(jnp.bfloat16), wldT_ref[...],
                preferred_element_type=jnp.float32) + bld_ref[...]
    d = _leaky_relu(d)
    d = _batchnorm1d_train(d, scal_ref[2], scal_ref[3])
    # ConvTranspose1d(1024, 1, kernel=D) on length-1 input == dense matmul.
    rec = jnp.dot(d.astype(jnp.bfloat16), wct_ref[...],
                  preferred_element_type=jnp.float32) + scal_ref[4]
    out_ref[...] = rec.astype(out_ref.dtype)


def prepare_params(params, input_dim):
    """One-time layout work (hoisted out of the per-call forward path):
    pre-transpose, zero-pad to lane-dense (multiples of 128 lanes), cast all
    weights to bf16, and pack the five (1,1)/scalar params into one SMEM array.
    Zero padding keeps the math exact; bf16 halves weight HBM traffic."""
    D = input_dim
    latent_dim = params["w_lin_enc"].shape[0]
    D_pad = pl.cdiv(D, 128) * 128
    LAT_pad = pl.cdiv(latent_dim, 128) * 128

    prepped = {
        "wceT": jnp.pad(params["w_conv_enc"].T,
                        ((0, D_pad - D), (0, 0))).astype(jnp.bfloat16),
        "bce": params["b_conv_enc"].astype(jnp.float32),
        "wleT": jnp.pad(params["w_lin_enc"].T,
                        ((0, 0), (0, LAT_pad - latent_dim))).astype(jnp.bfloat16),
        "ble": jnp.pad(params["b_lin_enc"],
                       ((0, 0), (0, LAT_pad - latent_dim))).astype(jnp.float32),
        "wldT": jnp.pad(params["w_lin_dec"].T,
                        ((0, LAT_pad - latent_dim), (0, 0))).astype(jnp.bfloat16),
        "bld": params["b_lin_dec"].astype(jnp.float32),
        "wct": jnp.pad(params["w_convT_dec"],
                       ((0, 0), (0, D_pad - D))).astype(jnp.bfloat16),
        "scalars": jnp.stack(
            [params["bn_enc_gamma"], params["bn_enc_beta"],
             params["bn_dec_gamma"], params["bn_dec_beta"],
             params["b_convT_dec"]]).astype(jnp.float32),
    }
    return prepped, latent_dim


@functools.partial(jax.jit, static_argnames=("latent_dim",))
def autoencoder1d_forward(x, prepped, *, latent_dim):
    """x: [B, input_dim] f32.  Returns (latent [B, latent_dim], recon [B, 1, input_dim])."""
    B, D = x.shape
    D_pad = prepped["wceT"].shape[0]
    LAT_pad = prepped["wleT"].shape[1]

    # Per-call input layout: lane-dense pad + bf16 pre-cast (tiny O(B*D) work).
    x_p = jnp.pad(x, ((0, 0), (0, D_pad - D))).astype(jnp.bfloat16)

    vmem_args = (x_p, prepped["wceT"], prepped["bce"], prepped["wleT"], prepped["ble"],
                 prepped["wldT"], prepped["bld"], prepped["wct"])
    in_bytes = sum(int(a.size) * a.dtype.itemsize for a in vmem_args) + 5 * 4
    out_bytes = B * LAT_pad * 4 + B * D_pad * 4
    # All operands are VMEM-resident (no grid => single-buffered); leave headroom for
    # compiler-internal scratch and stay safely below physical VMEM on every chip.
    vmem_limit = int(min(max((in_bytes + out_bytes) * 2, 32 << 20), 96 << 20))

    flops = 2 * B * (D_pad * BASE_FEAT + BASE_FEAT * LAT_pad
                     + LAT_pad * BASE_FEAT + BASE_FEAT * D_pad)
    cost = pl.CostEstimate(flops=flops, transcendentals=2,
                           bytes_accessed=in_bytes + out_bytes)

    vmem = pl.BlockSpec(memory_space=pltpu.MemorySpace.VMEM)
    smem = pl.BlockSpec(memory_space=pltpu.MemorySpace.SMEM)

    latent_p, recon_p = pl.pallas_call(
        autoencoder1d_kernel,
        out_shape=(
            jax.ShapeDtypeStruct((B, LAT_pad), jnp.float32),
            jax.ShapeDtypeStruct((B, D_pad), jnp.float32),
        ),
        in_specs=[smem, vmem, vmem, vmem, vmem, vmem, vmem, vmem, vmem],
        out_specs=(vmem, vmem),
        compiler_params=pltpu.CompilerParams(vmem_limit_bytes=vmem_limit),
        cost_estimate=cost,
    )(prepped["scalars"], *vmem_args)

    latent = latent_p[:, :latent_dim]
    recon = recon_p[:, :D].reshape(B, 1, D)  # the PyTorch `Reshape` / NCL view
    return latent, recon


def autoencoder1d_reference(x, params):
    """Pure-JAX f32 reference (PyTorch semantics, BatchNorm in training mode)."""
    def bn(h, gamma, beta):
        mean = jnp.mean(h)
        var = jnp.mean((h - mean) ** 2)
        return (h - mean) * jax.lax.rsqrt(var + BN_EPS) * gamma + beta

    h = x @ params["w_conv_enc"].T + params["b_conv_enc"]
    h = _leaky_relu(h)
    h = bn(h, params["bn_enc_gamma"], params["bn_enc_beta"])
    lat = h @ params["w_lin_enc"].T + params["b_lin_enc"]
    d = lat @ params["w_lin_dec"].T + params["b_lin_dec"]
    d = _leaky_relu(d)
    d = bn(d, params["bn_dec_gamma"], params["bn_dec_beta"])
    rec = d @ params["w_convT_dec"] + params["b_convT_dec"]
    return lat, rec.reshape(x.shape[0], 1, -1)


def init_params(key, input_dim, latent_dim):
    """Deterministic parameter init (uniform, roughly matching PyTorch fan-in scaling)."""
    ks = jax.random.split(key, 8)

    def u(k, shape, fan_in):
        bound = 1.0 / jnp.sqrt(jnp.float32(fan_in))
        return jax.random.uniform(k, shape, jnp.float32, -bound, bound)

    return {
        # Encoder Conv2d(1, 1024, kernel=(1, D)): weight [1024, 1, 1, D] -> [1024, D]
        "w_conv_enc": u(ks[0], (BASE_FEAT, input_dim), input_dim),
        "b_conv_enc": u(ks[1], (1, BASE_FEAT), input_dim),
        "bn_enc_gamma": jnp.float32(1.0),
        "bn_enc_beta": jnp.float32(0.0),
        # Encoder Linear(1024, latent_dim): weight [latent, 1024]
        "w_lin_enc": u(ks[2], (latent_dim, BASE_FEAT), BASE_FEAT),
        "b_lin_enc": u(ks[3], (1, latent_dim), BASE_FEAT),
        # Decoder Linear(latent_dim, 1024): weight [1024, latent]
        "w_lin_dec": u(ks[4], (BASE_FEAT, latent_dim), latent_dim),
        "b_lin_dec": u(ks[5], (1, BASE_FEAT), latent_dim),
        "bn_dec_gamma": jnp.float32(1.0),
        "bn_dec_beta": jnp.float32(0.0),
        # Decoder ConvTranspose1d(1024, 1, kernel=D): weight [1024, 1, D] -> [1024, D]
        "w_convT_dec": u(ks[6], (BASE_FEAT, input_dim), BASE_FEAT),
        "b_convT_dec": u(ks[7], (), BASE_FEAT),
    }


if __name__ == "__main__":
    B = 8
    INPUT_DIM = 16
    LATENT_DIM = 2

    key = jax.random.PRNGKey(0)
    k_x, k_p = jax.random.split(key)

    x = jax.random.normal(k_x, (B, INPUT_DIM), jnp.float32)
    params = init_params(k_p, INPUT_DIM, LATENT_DIM)

    # One-time layout prep (hoisted out of the repeated forward path).
    prepped, latent_dim = prepare_params(params, INPUT_DIM)
    jax.block_until_ready(prepped)

    latent, recon = autoencoder1d_forward(x, prepped, latent_dim=latent_dim)
    jax.block_until_ready((latent, recon))

    assert latent.shape == (B, LATENT_DIM)
    assert recon.shape == (B, 1, INPUT_DIM)
    assert bool(jnp.all(jnp.isfinite(latent))) and bool(jnp.all(jnp.isfinite(recon)))

    # Pure-JAX f32 reference check (bf16 weights/activations -> ~1e-3-level error).
    lat_ref, rec_ref = autoencoder1d_reference(x, params)
    lat_err = float(jnp.max(jnp.abs(latent - lat_ref)))
    rec_err = float(jnp.max(jnp.abs(recon - rec_ref)))
    assert lat_err < 0.1 and rec_err < 0.1, (lat_err, rec_err)

    print("KERNEL_OK")
</pallas_src>

<mosaic_0001>
module attributes {stable_mosaic.version = 11 : i64} {
  func.func @autoencoder1d_kernel(%arg0: memref<5xf32, #tpu.memory_space<smem>>, %arg1: memref<8x128xbf16, #tpu.memory_space<vmem>>, %arg2: memref<128x1024xbf16, #tpu.memory_space<vmem>>, %arg3: memref<1x1024xf32, #tpu.memory_space<vmem>>, %arg4: memref<1024x128xbf16, #tpu.memory_space<vmem>>, %arg5: memref<1x128xf32, #tpu.memory_space<vmem>>, %arg6: memref<128x1024xbf16, #tpu.memory_space<vmem>>, %arg7: memref<1x1024xf32, #tpu.memory_space<vmem>>, %arg8: memref<1024x128xbf16, #tpu.memory_space<vmem>>, %arg9: memref<8x128xf32, #tpu.memory_space<vmem>>, %arg10: memref<8x128xf32, #tpu.memory_space<vmem>>) attributes {dimension_semantics = [], scalar_prefetch = 0 : i64, scratch_operands = 0 : i64, tpu.core_type = #tpu.core_type<tc>} {
    %c0 = arith.constant 0 : index
    %c0_0 = arith.constant 0 : index
    %0 = vector.load %arg1[%c0, %c0_0] : memref<8x128xbf16, #tpu.memory_space<vmem>>, vector<8x128xbf16>
    %c0_1 = arith.constant 0 : index
    %c0_2 = arith.constant 0 : index
    %1 = vector.load %arg2[%c0_1, %c0_2] : memref<128x1024xbf16, #tpu.memory_space<vmem>>, vector<128x1024xbf16>
    %cst = arith.constant dense<0.000000e+00> : vector<8x1024xf32>
    %2 = tpu.matmul %0, %1, %cst {dimension_numbers = #tpu.dot_dimension_numbers<[1], [0], [0], [1], [0, 0, 1, 1], [], []>} : vector<8x128xbf16>, vector<128x1024xbf16>, vector<8x1024xf32> -> vector<8x1024xf32>
    %c0_3 = arith.constant 0 : index
    %c0_4 = arith.constant 0 : index
    %3 = vector.load %arg3[%c0_3, %c0_4] : memref<1x1024xf32, #tpu.memory_space<vmem>>, vector<1x1024xf32>
    %4 = vector.broadcast %3 : vector<1x1024xf32> to vector<8x1024xf32>
    %5 = arith.addf %2, %4 : vector<8x1024xf32>
    %cst_5 = arith.constant 0.000000e+00 : f32
    %6 = vector.broadcast %cst_5 : f32 to vector<8x1024xf32>
    %7 = arith.cmpf ogt, %5, %6 : vector<8x1024xf32>
    %cst_6 = arith.constant 0.00999999977 : f32
    %8 = vector.broadcast %cst_6 : f32 to vector<8x1024xf32>
    %9 = arith.mulf %8, %5 : vector<8x1024xf32>
    %10 = arith.select %7, %5, %9 : vector<8x1024xi1>, vector<8x1024xf32>
    %c0_7 = arith.constant 0 : index
    %11 = memref.load %arg0[%c0_7] : memref<5xf32, #tpu.memory_space<smem>>
    %c1 = arith.constant 1 : index
    %12 = memref.load %arg0[%c1] : memref<5xf32, #tpu.memory_space<smem>>
    %13 = vector.shape_cast %10 : vector<8x1024xf32> to vector<1x8x1024xf32>
    %cst_8 = arith.constant dense<0.000000e+00> : vector<1xf32>
    %14 = vector.multi_reduction <add>, %13, %cst_8 [1, 2] : vector<1x8x1024xf32> to vector<1xf32>
    %15 = vector.shape_cast %14 : vector<1xf32> to vector<1x1x1xf32>
    %16 = vector.extract %15[0, 0, 0] : f32 from vector<1x1x1xf32>
    %17 = arith.mulf %10, %10 : vector<8x1024xf32>
    %18 = vector.shape_cast %17 : vector<8x1024xf32> to vector<1x8x1024xf32>
    %cst_9 = arith.constant dense<0.000000e+00> : vector<1xf32>
    %19 = vector.multi_reduction <add>, %18, %cst_9 [1, 2] : vector<1x8x1024xf32> to vector<1xf32>
    %20 = vector.shape_cast %19 : vector<1xf32> to vector<1x1x1xf32>
    %21 = vector.extract %20[0, 0, 0] : f32 from vector<1x1x1xf32>
    %cst_10 = arith.constant 8.192000e+03 : f32
    %22 = arith.divf %16, %cst_10 : f32
    %cst_11 = arith.constant 8.192000e+03 : f32
    %23 = arith.divf %21, %cst_11 : f32
    %24 = arith.mulf %22, %22 : f32
    %25 = arith.subf %23, %24 : f32
    %cst_12 = arith.constant 0.000000e+00 : f32
    %26 = arith.maximumf %25, %cst_12 : f32
    %cst_13 = arith.constant 9.99999974E-6 : f32
    %27 = arith.addf %26, %cst_13 : f32
    %28 = math.rsqrt %27 : f32
    %29 = arith.mulf %28, %11 : f32
    %30 = vector.broadcast %22 : f32 to vector<8x1024xf32>
    %31 = arith.subf %10, %30 : vector<8x1024xf32>
    %32 = vector.broadcast %29 : f32 to vector<8x1024xf32>
    %33 = arith.mulf %31, %32 : vector<8x1024xf32>
    %34 = vector.broadcast %12 : f32 to vector<8x1024xf32>
    %35 = arith.addf %33, %34 : vector<8x1024xf32>
    %36 = arith.truncf %35 : vector<8x1024xf32> to vector<8x1024xbf16>
    %c0_14 = arith.constant 0 : index
    %c0_15 = arith.constant 0 : index
    %37 = vector.load %arg4[%c0_14, %c0_15] : memref<1024x128xbf16, #tpu.memory_space<vmem>>, vector<1024x128xbf16>
    %cst_16 = arith.constant dense<0.000000e+00> : vector<8x128xf32>
    %38 = tpu.matmul %36, %37, %cst_16 {dimension_numbers = #tpu.dot_dimension_numbers<[1], [0], [0], [1], [0, 0, 1, 1], [], []>} : vector<8x1024xbf16>, vector<1024x128xbf16>, vector<8x128xf32> -> vector<8x128xf32>
    %c0_17 = arith.constant 0 : index
    %c0_18 = arith.constant 0 : index
    %39 = vector.load %arg5[%c0_17, %c0_18] : memref<1x128xf32, #tpu.memory_space<vmem>>, vector<1x128xf32>
    %40 = vector.broadcast %39 : vector<1x128xf32> to vector<8x128xf32>
    %41 = arith.addf %38, %40 : vector<8x128xf32>
    %c0_19 = arith.constant 0 : index
    %c0_20 = arith.constant 0 : index
    %42 = vector.load %arg9[%c0_19, %c0_20] : memref<8x128xf32, #tpu.memory_space<vmem>>, vector<8x128xf32>
    tpu.vector_store %arg9[%c0_19, %c0_20], %41 {strides = array<i32>} : memref<8x128xf32, #tpu.memory_space<vmem>>, vector<8x128xf32>,
    %43 = arith.truncf %41 : vector<8x128xf32> to vector<8x128xbf16>
    %c0_21 = arith.constant 0 : index
    %c0_22 = arith.constant 0 : index
    %44 = vector.load %arg6[%c0_21, %c0_22] : memref<128x1024xbf16, #tpu.memory_space<vmem>>, vector<128x1024xbf16>
    %cst_23 = arith.constant dense<0.000000e+00> : vector<8x1024xf32>
    %45 = tpu.matmul %43, %44, %cst_23 {dimension_numbers = #tpu.dot_dimension_numbers<[1], [0], [0], [1], [0, 0, 1, 1], [], []>} : vector<8x128xbf16>, vector<128x1024xbf16>, vector<8x1024xf32> -> vector<8x1024xf32>
    %c0_24 = arith.constant 0 : index
    %c0_25 = arith.constant 0 : index
    %46 = vector.load %arg7[%c0_24, %c0_25] : memref<1x1024xf32, #tpu.memory_space<vmem>>, vector<1x1024xf32>
    %47 = vector.broadcast %46 : vector<1x1024xf32> to vector<8x1024xf32>
    %48 = arith.addf %45, %47 : vector<8x1024xf32>
    %cst_26 = arith.constant 0.000000e+00 : f32
    %49 = vector.broadcast %cst_26 : f32 to vector<8x1024xf32>
    %50 = arith.cmpf ogt, %48, %49 : vector<8x1024xf32>
    %cst_27 = arith.constant 0.00999999977 : f32
    %51 = vector.broadcast %cst_27 : f32 to vector<8x1024xf32>
    %52 = arith.mulf %51, %48 : vector<8x1024xf32>
    %53 = arith.select %50, %48, %52 : vector<8x1024xi1>, vector<8x1024xf32>
    %c2 = arith.constant 2 : index
    %54 = memref.load %arg0[%c2] : memref<5xf32, #tpu.memory_space<smem>>
    %c3 = arith.constant 3 : index
    %55 = memref.load %arg0[%c3] : memref<5xf32, #tpu.memory_space<smem>>
    %56 = vector.shape_cast %53 : vector<8x1024xf32> to vector<1x8x1024xf32>
    %cst_28 = arith.constant dense<0.000000e+00> : vector<1xf32>
    %57 = vector.multi_reduction <add>, %56, %cst_28 [1, 2] : vector<1x8x1024xf32> to vector<1xf32>
    %58 = vector.shape_cast %57 : vector<1xf32> to vector<1x1x1xf32>
    %59 = vector.extract %58[0, 0, 0] : f32 from vector<1x1x1xf32>
    %60 = arith.mulf %53, %53 : vector<8x1024xf32>
    %61 = vector.shape_cast %60 : vector<8x1024xf32> to vector<1x8x1024xf32>
    %cst_29 = arith.constant dense<0.000000e+00> : vector<1xf32>
    %62 = vector.multi_reduction <add>, %61, %cst_29 [1, 2] : vector<1x8x1024xf32> to vector<1xf32>
    %63 = vector.shape_cast %62 : vector<1xf32> to vector<1x1x1xf32>
    %64 = vector.extract %63[0, 0, 0] : f32 from vector<1x1x1xf32>
    %cst_30 = arith.constant 8.192000e+03 : f32
    %65 = arith.divf %59, %cst_30 : f32
    %cst_31 = arith.constant 8.192000e+03 : f32
    %66 = arith.divf %64, %cst_31 : f32
    %67 = arith.mulf %65, %65 : f32
    %68 = arith.subf %66, %67 : f32
    %cst_32 = arith.constant 0.000000e+00 : f32
    %69 = arith.maximumf %68, %cst_32 : f32
    %cst_33 = arith.constant 9.99999974E-6 : f32
    %70 = arith.addf %69, %cst_33 : f32
    %71 = math.rsqrt %70 : f32
    %72 = arith.mulf %71, %54 : f32
    %73 = vector.broadcast %65 : f32 to vector<8x1024xf32>
    %74 = arith.subf %53, %73 : vector<8x1024xf32>
    %75 = vector.broadcast %72 : f32 to vector<8x1024xf32>
    %76 = arith.mulf %74, %75 : vector<8x1024xf32>
    %77 = vector.broadcast %55 : f32 to vector<8x1024xf32>
    %78 = arith.addf %76, %77 : vector<8x1024xf32>
    %79 = arith.truncf %78 : vector<8x1024xf32> to vector<8x1024xbf16>
    %c0_34 = arith.constant 0 : index
    %c0_35 = arith.constant 0 : index
    %80 = vector.load %arg8[%c0_34, %c0_35] : memref<1024x128xbf16, #tpu.memory_space<vmem>>, vector<1024x128xbf16>
    %cst_36 = arith.constant dense<0.000000e+00> : vector<8x128xf32>
    %81 = tpu.matmul %79, %80, %cst_36 {dimension_numbers = #tpu.dot_dimension_numbers<[1], [0], [0], [1], [0, 0, 1, 1], [], []>} : vector<8x1024xbf16>, vector<1024x128xbf16>, vector<8x128xf32> -> vector<8x128xf32>
    %c4 = arith.constant 4 : index
    %82 = memref.load %arg0[%c4] : memref<5xf32, #tpu.memory_space<smem>>
    %83 = vector.broadcast %82 : f32 to vector<8x128xf32>
    %84 = arith.addf %81, %83 : vector<8x128xf32>
    %c0_37 = arith.constant 0 : index
    %c0_38 = arith.constant 0 : index
    %85 = vector.load %arg10[%c0_37, %c0_38] : memref<8x128xf32, #tpu.memory_space<vmem>>, vector<8x128xf32>
    tpu.vector_store %arg10[%c0_37, %c0_38], %84 {strides = array<i32>} : memref<8x128xf32, #tpu.memory_space<vmem>>, vector<8x128xf32>,
    return
  }
}

</mosaic_0001>

<llo_original>
// kernel: autoencoder1d_forward.1
$region0: #{autoencoder1d_forward.1}
  #allocation0 [shape = 'u32[]', space=smem, size = 0x4, offset = 0x4, fixed_abs, tag = 'smem constant byte address 0x4 - core index']
  #allocation1 [shape = 'u32[144,128]{1,0:T(1,128)}', space=vmem, size = 0x12000, scoped, tag = 'internal scratch']
  %s0 = inlined_call_operand.vmem [shape: f32[5], index: 0, kind: input, shape index: {}]
  %s1 = inlined_call_operand.vmem [shape: bf16[8,128], index: 1, kind: input, shape index: {}]
  %s2 = inlined_call_operand.hbm [shape: bf16[128,1024], index: 2, kind: input, shape index: {}]
  %s3 = inlined_call_operand.vmem [shape: f32[1,1024], index: 3, kind: input, shape index: {}]
  %s4 = inlined_call_operand.hbm [shape: bf16[1024,128], index: 4, kind: input, shape index: {}]
  %s5 = inlined_call_operand.vmem [shape: f32[1,128], index: 5, kind: input, shape index: {}]
  %s6 = inlined_call_operand.hbm [shape: bf16[128,1024], index: 6, kind: input, shape index: {}]
  %s7 = inlined_call_operand.vmem [shape: f32[1,1024], index: 7, kind: input, shape index: {}]
  %s8 = inlined_call_operand.hbm [shape: bf16[1024,128], index: 8, kind: input, shape index: {}]
  %s9 = inlined_call_operand.vmem [shape: f32[8,128], index: 9, kind: output, shape index: {0}]
  %s10 = inlined_call_operand.hbm [shape: f32[8,128], index: 10, kind: output, shape index: {1}]
  %11 = xla_tuple %s9, %s10
  %s12 = sld [smem:[#allocation0]]
  $region74: #{autoencoder1d_forward.1} parent=0
    _
  %s14 = ssub.s32 1, %s12
  %s15 = scalar_select 0, %s14, %s12
  $region1: #{autoencoder1d_forward.1} parent=0
    #allocation2 [shape = 'u8[512]{0}', space=smem, size = 0x200, scoped, tag = 'input window, operand 0, single buffered']
    #allocation3 [shape = 's32[1]{0}', space=sflag, size = 0x4, scoped, tag = 'scoped memory for autoencoder1d_forward.1']
    #allocation4 [shape = 's32[1]{0}', space=sflag, size = 0x4, scoped, tag = 'scoped memory for autoencoder1d_forward.1']
    #allocation5 [shape = 's32[1]{0}', space=sflag, size = 0x4, scoped, tag = 'scoped memory for autoencoder1d_forward.1']
    #allocation6 [shape = 'u8[262144]{0}', space=vmem, size = 0x40000, scoped, tag = 'input window, operand 2, single buffered']
    #allocation7 [shape = 'u8[262144]{0}', space=vmem, size = 0x40000, scoped, tag = 'input window, operand 4, single buffered']
    #allocation8 [shape = 's32[1]{0}', space=sflag, size = 0x4, scoped, tag = 'scoped memory for autoencoder1d_forward.1']
    #allocation9 [shape = 'u8[262144]{0}', space=vmem, size = 0x40000, scoped, tag = 'input window, operand 6, single buffered']
    #allocation10 [shape = 'u8[262144]{0}', space=vmem, size = 0x40000, scoped, tag = 'input window, operand 8, single buffered']
    #allocation11 [shape = 's32[1]{0}', space=sflag, size = 0x4, scoped, tag = 'scoped memory for autoencoder1d_forward.1']
    #allocation12 [shape = 'u8[4096]{0}', space=vmem, size = 0x1000, scoped, tag = 'output window, operand 1, single buffered']
    %16 = vsyncpa [#allocation5], 0
    %17 = vsyncpa [#allocation3], 0
    %18 = vsyncpa [#allocation8], 0
    %19 = vsyncpa [#allocation11], 0
    %20 = vsyncpa [#allocation4], 0
    // Predicated region
    $region2: #{autoencoder1d_forward.1} parent=1 // pred_check
      _
    $region3: #{autoencoder1d_forward.1} parent=1 // pred_check_branch
      %22 = sbr.rel (0) target = $region5
    $region4: #{autoencoder1d_forward.1} parent=1 // pred_region
      %s24 = ssub.s32 16, 16
      %25 = vsyncadd [#allocation5], %s24
      %s27 = sshll.u32 %s0, 4
      %s28 = int_to_ptr.vmem [resolvable:$true] %s27
      %30 = dma.vmem_to_smem %s28, 16, [#allocation2], [#allocation5]
    $region5: #{autoencoder1d_forward.1} parent=1 // pred_fallthru
      _
    // Predicated region
    $region6: #{autoencoder1d_forward.1} parent=1 // pred_check
      _
    $region7: #{autoencoder1d_forward.1} parent=1 // pred_check_branch
      %32 = sbr.rel (0) target = $region9
    $region8: #{autoencoder1d_forward.1} parent=1 // pred_region
      _
    $region9: #{autoencoder1d_forward.1} parent=1 // pred_fallthru
      _
    // Predicated region
    $region10: #{autoencoder1d_forward.1} parent=1 // pred_check
      _
    $region11: #{autoencoder1d_forward.1} parent=1 // pred_check_branch
      %34 = sbr.rel (0) target = $region13
    $region12: #{autoencoder1d_forward.1} parent=1 // pred_region
      %s36 = ssub.s32 8192, 8192
      %37 = vsyncadd [#allocation3], %s36
      %s38 = sshll.u32 [#allocation6], 4
      %s39 = int_to_ptr.vmem [resolvable:$true] %s38
      %44 = dma.hbm_to_vmem [thread:$0]  %s2, 8192, %s39, [#allocation3], 512, 512, 32
    $region13: #{autoencoder1d_forward.1} parent=1 // pred_fallthru
      _
    // Predicated region
    $region14: #{autoencoder1d_forward.1} parent=1 // pred_check
      _
    $region15: #{autoencoder1d_forward.1} parent=1 // pred_check_branch
      %46 = sbr.rel (0) target = $region17
    $region16: #{autoencoder1d_forward.1} parent=1 // pred_region
      _
    $region17: #{autoencoder1d_forward.1} parent=1 // pred_fallthru
      _
    // Predicated region
    $region18: #{autoencoder1d_forward.1} parent=1 // pred_check
      _
    $region19: #{autoencoder1d_forward.1} parent=1 // pred_check_branch
      %48 = sbr.rel (0) target = $region21
    $region20: #{autoencoder1d_forward.1} parent=1 // pred_region
      %s50 = ssub.s32 8192, 8192
      %51 = vsyncadd [#allocation8], %s50
      %s52 = sshll.u32 [#allocation7], 4
      %s53 = int_to_ptr.vmem [resolvable:$true] %s52
      %58 = dma.hbm_to_vmem [thread:$0]  %s4, 8192, %s53, [#allocation8], 64, 64, 4
    $region21: #{autoencoder1d_forward.1} parent=1 // pred_fallthru
      _
    // Predicated region
    $region22: #{autoencoder1d_forward.1} parent=1 // pred_check
      _
    $region23: #{autoencoder1d_forward.1} parent=1 // pred_check_branch
      %60 = sbr.rel (0) target = $region25
    $region24: #{autoencoder1d_forward.1} parent=1 // pred_region
      _
    $region25: #{autoencoder1d_forward.1} parent=1 // pred_fallthru
      _
    // Predicated region
    $region26: #{autoencoder1d_forward.1} parent=1 // pred_check
      _
    $region27: #{autoencoder1d_forward.1} parent=1 // pred_check_branch
      %62 = sbr.rel (0) target = $region29
    $region28: #{autoencoder1d_forward.1} parent=1 // pred_region
      %s64 = ssub.s32 8192, 8192
      %65 = vsyncadd [#allocation8], %s64
      %s66 = sshll.u32 [#allocation9], 4
      %s67 = int_to_ptr.vmem [resolvable:$true] %s66
      %72 = dma.hbm_to_vmem [thread:$0]  %s6, 8192, %s67, [#allocation8], 512, 512, 32
    $region29: #{autoencoder1d_forward.1} parent=1 // pred_fallthru
      _
    // Predicated region
    $region30: #{autoencoder1d_forward.1} parent=1 // pred_check
      _
    $region31: #{autoencoder1d_forward.1} parent=1 // pred_check_branch
      %74 = sbr.rel (0) target = $region33
    $region32: #{autoencoder1d_forward.1} parent=1 // pred_region
      _
    $region33: #{autoencoder1d_forward.1} parent=1 // pred_fallthru
      _
    // Predicated region
    $region34: #{autoencoder1d_forward.1} parent=1 // pred_check
      _
    $region35: #{autoencoder1d_forward.1} parent=1 // pred_check_branch
      %76 = sbr.rel (0) target = $region37
    $region36: #{autoencoder1d_forward.1} parent=1 // pred_region
      %s78 = ssub.s32 8192, 8192
      %79 = vsyncadd [#allocation11], %s78
      %s80 = sshll.u32 [#allocation10], 4
      %s81 = int_to_ptr.vmem [resolvable:$true] %s80
      %86 = dma.hbm_to_vmem [thread:$0]  %s8, 8192, %s81, [#allocation11], 64, 64, 4
    $region37: #{autoencoder1d_forward.1} parent=1 // pred_fallthru
      _
    // Predicated region
    $region38: #{autoencoder1d_forward.1} parent=1 // pred_check
      _
    $region39: #{autoencoder1d_forward.1} parent=1 // pred_check_branch
      %88 = sbr.rel (0) target = $region41
    $region40: #{autoencoder1d_forward.1} parent=1 // pred_region
      %89 = dma.done [#allocation5], 16
    $region41: #{autoencoder1d_forward.1} parent=1 // pred_fallthru
      _
    // Predicated region
    $region42: #{autoencoder1d_forward.1} parent=1 // pred_check
      _
    $region43: #{autoencoder1d_forward.1} parent=1 // pred_check_branch
      %91 = sbr.rel (0) target = $region45
    $region44: #{autoencoder1d_forward.1} parent=1 // pred_region
      %92 = dma.done [#allocation3], 8192
    $region45: #{autoencoder1d_forward.1} parent=1 // pred_fallthru
      _
    // Predicated region
    $region46: #{autoencoder1d_forward.1} parent=1 // pred_check
      _
    $region47: #{autoencoder1d_forward.1} parent=1 // pred_check_branch
      %94 = sbr.rel (0) target = $region49
    $region48: #{autoencoder1d_forward.1} parent=1 // pred_region
      %95 = dma.done [#allocation8], 8192
    $region49: #{autoencoder1d_forward.1} parent=1 // pred_fallthru
      _
    // Predicated region
    $region50: #{autoencoder1d_forward.1} parent=1 // pred_check
      _
    $region51: #{autoencoder1d_forward.1} parent=1 // pred_check_branch
      %97 = sbr.rel (0) target = $region53
    $region52: #{autoencoder1d_forward.1} parent=1 // pred_region
      %98 = dma.done [#allocation8], 8192
    $region53: #{autoencoder1d_forward.1} parent=1 // pred_fallthru
      _
    // Predicated region
    $region54: #{autoencoder1d_forward.1} parent=1 // pred_check
      _
    $region55: #{autoencoder1d_forward.1} parent=1 // pred_check_branch
      %100 = sbr.rel (0) target = $region57
    $region56: #{autoencoder1d_forward.1} parent=1 // pred_region
      %101 = dma.done [#allocation11], 8192
    $region57: #{autoencoder1d_forward.1} parent=1 // pred_fallthru
      _
    %102 = sfence
    %v104 = vld [vmem:[%s1] sm:$0xf]
    %v105 = vld [vmem:[#allocation6] sm:$0xff]
    %v106 = vld [vmem:[#allocation6 + $0x8] sm:$0xff]
    %v107 = vld [vmem:[#allocation6 + $0x10] sm:$0xff]
    %v108 = vld [vmem:[#allocation6 + $0x18] sm:$0xff]
    %v109 = vld [vmem:[#allocation6 + $0x20] sm:$0xff]
    %v110 = vld [vmem:[#allocation6 + $0x28] sm:$0xff]
    %v111 = vld [vmem:[#allocation6 + $0x30] sm:$0xff]
    %v112 = vld [vmem:[#allocation6 + $0x38] sm:$0xff]
    %v113 = vld [vmem:[#allocation6 + $0x40] sm:$0xff]
    %v114 = vld [vmem:[#allocation6 + $0x48] sm:$0xff]
    %v115 = vld [vmem:[#allocation6 + $0x50] sm:$0xff]
    %v116 = vld [vmem:[#allocation6 + $0x58] sm:$0xff]
    %v117 = vld [vmem:[#allocation6 + $0x60] sm:$0xff]
    %v118 = vld [vmem:[#allocation6 + $0x68] sm:$0xff]
    %v119 = vld [vmem:[#allocation6 + $0x70] sm:$0xff]
    %v120 = vld [vmem:[#allocation6 + $0x78] sm:$0xff]
    %v121 = vld [vmem:[#allocation6 + $0x80] sm:$0xff]
    %v122 = vld [vmem:[#allocation6 + $0x88] sm:$0xff]
    %v123 = vld [vmem:[#allocation6 + $0x90] sm:$0xff]
    %v124 = vld [vmem:[#allocation6 + $0x98] sm:$0xff]
    %v125 = vld [vmem:[#allocation6 + $0xa0] sm:$0xff]
    %v126 = vld [vmem:[#allocation6 + $0xa8] sm:$0xff]
    %v127 = vld [vmem:[#allocation6 + $0xb0] sm:$0xff]
    %v128 = vld [vmem:[#allocation6 + $0xb8] sm:$0xff]
    %v129 = vld [vmem:[#allocation6 + $0xc0] sm:$0xff]
    %v130 = vld [vmem:[#allocation6 + $0xc8] sm:$0xff]
    %v131 = vld [vmem:[#allocation6 + $0xd0] sm:$0xff]
    %v132 = vld [vmem:[#allocation6 + $0xd8] sm:$0xff]
    %v133 = vld [vmem:[#allocation6 + $0xe0] sm:$0xff]
    %v134 = vld [vmem:[#allocation6 + $0xe8] sm:$0xff]
    %v135 = vld [vmem:[#allocation6 + $0xf0] sm:$0xff]
    %v136 = vld [vmem:[#allocation6 + $0xf8] sm:$0xff]
    %v137 = vld [vmem:[#allocation6 + $0x100] sm:$0xff]
    %v138 = vld [vmem:[#allocation6 + $0x108] sm:$0xff]
    %v139 = vld [vmem:[#allocation6 + $0x110] sm:$0xff]
    %v140 = vld [vmem:[#allocation6 + $0x118] sm:$0xff]
    %v141 = vld [vmem:[#allocation6 + $0x120] sm:$0xff]
    %v142 = vld [vmem:[#allocation6 + $0x128] sm:$0xff]
    %v143 = vld [vmem:[#allocation6 + $0x130] sm:$0xff]
    %v144 = vld [vmem:[#allocation6 + $0x138] sm:$0xff]
    %v145 = vld [vmem:[#allocation6 + $0x140] sm:$0xff]
    %v146 = vld [vmem:[#allocation6 + $0x148] sm:$0xff]
    %v147 = vld [vmem:[#allocation6 + $0x150] sm:$0xff]
    %v148 = vld [vmem:[#allocation6 + $0x158] sm:$0xff]
    %v149 = vld [vmem:[#allocation6 + $0x160] sm:$0xff]
    %v150 = vld [vmem:[#allocation6 + $0x168] sm:$0xff]
    %v151 = vld [vmem:[#allocation6 + $0x170] sm:$0xff]
    %v152 = vld [vmem:[#allocation6 + $0x178] sm:$0xff]
    %v153 = vld [vmem:[#allocation6 + $0x180] sm:$0xff]
    %v154 = vld [vmem:[#allocation6 + $0x188] sm:$0xff]
    %v155 = vld [vmem:[#allocation6 + $0x190] sm:$0xff]
    %v156 = vld [vmem:[#allocation6 + $0x198] sm:$0xff]
    %v157 = vld [vmem:[#allocation6 + $0x1a0] sm:$0xff]
    %v158 = vld [vmem:[#allocation6 + $0x1a8] sm:$0xff]
    %v159 = vld [vmem:[#allocation6 + $0x1b0] sm:$0xff]
    %v160 = vld [vmem:[#allocation6 + $0x1b8] sm:$0xff]
    %v161 = vld [vmem:[#allocation6 + $0x1c0] sm:$0xff]
    %v162 = vld [vmem:[#allocation6 + $0x1c8] sm:$0xff]
    %v163 = vld [vmem:[#allocation6 + $0x1d0] sm:$0xff]
    %v164 = vld [vmem:[#allocation6 + $0x1d8] sm:$0xff]
    %v165 = vld [vmem:[#allocation6 + $0x1e0] sm:$0xff]
    %v166 = vld [vmem:[#allocation6 + $0x1e8] sm:$0xff]
    %v167 = vld [vmem:[#allocation6 + $0x1f0] sm:$0xff]
    %v168 = vld [vmem:[#allocation6 + $0x1f8] sm:$0xff]
    %v169 = vld [vmem:[%s3] sm:$0xff]
    %v171 = vlaneseq
    %v172 = vshrl.u32 %v171, 7
    %v173 = vsub.s32 0, %v172
    %v174 = vrot.slane %v169, %v173
    %v175 = vlaneseq
    %v176 = vshrl.u32 %v175, 7
    %v177 = vsub.s32 1, %v176
    %v178 = vrot.slane %v169, %v177
    %v179 = vlaneseq
    %v180 = vshrl.u32 %v179, 7
    %v181 = vsub.s32 2, %v180
    %v182 = vrot.slane %v169, %v181
    %v183 = vlaneseq
    %v184 = vshrl.u32 %v183, 7
    %v185 = vsub.s32 3, %v184
    %v186 = vrot.slane %v169, %v185
    %v187 = vlaneseq
    %v188 = vshrl.u32 %v187, 7
    %v189 = vsub.s32 4, %v188
    %v190 = vrot.slane %v169, %v189
    %v191 = vlaneseq
    %v192 = vshrl.u32 %v191, 7
    %v193 = vsub.s32 5, %v192
    %v194 = vrot.slane %v169, %v193
    %v195 = vlaneseq
    %v196 = vshrl.u32 %v195, 7
    %v197 = vsub.s32 6, %v196
    %v198 = vrot.slane %v169, %v197
    %v199 = vlaneseq
    %v200 = vshrl.u32 %v199, 7
    %v201 = vsub.s32 7, %v200
    %v202 = vrot.slane %v169, %v201
    %v275 = vunpack.c.l.b16 %v105
    %v276 = vunpack.c.h.b16 %v105
    %v277 = vunpack.c.l.b16 %v106
    %v278 = vunpack.c.h.b16 %v106
    %v279 = vunpack.c.l.b16 %v107
    %v280 = vunpack.c.h.b16 %v107
    %v281 = vunpack.c.l.b16 %v108
    %v282 = vunpack.c.h.b16 %v108
    %v283 = vunpack.c.l.b16 %v109
    %v284 = vunpack.c.h.b16 %v109
    %v285 = vunpack.c.l.b16 %v110
    %v286 = vunpack.c.h.b16 %v110
    %v287 = vunpack.c.l.b16 %v111
    %v288 = vunpack.c.h.b16 %v111
    %v289 = vunpack.c.l.b16 %v112
    %v290 = vunpack.c.h.b16 %v112
    %v291 = vunpack.c.l.b16 %v113
    %v292 = vunpack.c.h.b16 %v113
    %v293 = vunpack.c.l.b16 %v114
    %v294 = vunpack.c.h.b16 %v114
    %v295 = vunpack.c.l.b16 %v115
    %v296 = vunpack.c.h.b16 %v115
    %v297 = vunpack.c.l.b16 %v116
    %v298 = vunpack.c.h.b16 %v116
    %v299 = vunpack.c.l.b16 %v117
    %v300 = vunpack.c.h.b16 %v117
    %v301 = vunpack.c.l.b16 %v118
    %v302 = vunpack.c.h.b16 %v118
    %v303 = vunpack.c.l.b16 %v119
    %v304 = vunpack.c.h.b16 %v119
    %v305 = vunpack.c.l.b16 %v120
    %v306 = vunpack.c.h.b16 %v120
    %v307 = vunpack.c.l.b16 %v121
    %v308 = vunpack.c.h.b16 %v121
    %v309 = vunpack.c.l.b16 %v122
    %v310 = vunpack.c.h.b16 %v122
    %v311 = vunpack.c.l.b16 %v123
    %v312 = vunpack.c.h.b16 %v123
    %v313 = vunpack.c.l.b16 %v124
    %v314 = vunpack.c.h.b16 %v124
    %v315 = vunpack.c.l.b16 %v125
    %v316 = vunpack.c.h.b16 %v125
    %v317 = vunpack.c.l.b16 %v126
    %v318 = vunpack.c.h.b16 %v126
    %v319 = vunpack.c.l.b16 %v127
    %v320 = vunpack.c.h.b16 %v127
    %v321 = vunpack.c.l.b16 %v128
    %v322 = vunpack.c.h.b16 %v128
    %v323 = vunpack.c.l.b16 %v129
    %v324 = vunpack.c.h.b16 %v129
    %v325 = vunpack.c.l.b16 %v130
    %v326 = vunpack.c.h.b16 %v130
    %v327 = vunpack.c.l.b16 %v131
    %v328 = vunpack.c.h.b16 %v131
    %v329 = vunpack.c.l.b16 %v132
    %v330 = vunpack.c.h.b16 %v132
    %v331 = vunpack.c.l.b16 %v133
    %v332 = vunpack.c.h.b16 %v133
    %v333 = vunpack.c.l.b16 %v134
    %v334 = vunpack.c.h.b16 %v134
    %v335 = vunpack.c.l.b16 %v135
    %v336 = vunpack.c.h.b16 %v135
    %v337 = vunpack.c.l.b16 %v136
    %v338 = vunpack.c.h.b16 %v136
    %v339 = vunpack.c.l.b16 %v137
    %v340 = vunpack.c.h.b16 %v137
    %v341 = vunpack.c.l.b16 %v138
    %v342 = vunpack.c.h.b16 %v138
    %v343 = vunpack.c.l.b16 %v139
    %v344 = vunpack.c.h.b16 %v139
    %v345 = vunpack.c.l.b16 %v140
    %v346 = vunpack.c.h.b16 %v140
    %v347 = vunpack.c.l.b16 %v141
    %v348 = vunpack.c.h.b16 %v141
    %v349 = vunpack.c.l.b16 %v142
    %v350 = vunpack.c.h.b16 %v142
    %v351 = vunpack.c.l.b16 %v143
    %v352 = vunpack.c.h.b16 %v143
    %v353 = vunpack.c.l.b16 %v144
    %v354 = vunpack.c.h.b16 %v144
    %v355 = vunpack.c.l.b16 %v145
    %v356 = vunpack.c.h.b16 %v145
    %v357 = vunpack.c.l.b16 %v146
    %v358 = vunpack.c.h.b16 %v146
    %v359 = vunpack.c.l.b16 %v147
    %v360 = vunpack.c.h.b16 %v147
    %v361 = vunpack.c.l.b16 %v148
    %v362 = vunpack.c.h.b16 %v148
    %v363 = vunpack.c.l.b16 %v149
    %v364 = vunpack.c.h.b16 %v149
    %v365 = vunpack.c.l.b16 %v150
    %v366 = vunpack.c.h.b16 %v150
    %v367 = vunpack.c.l.b16 %v151
    %v368 = vunpack.c.h.b16 %v151
    %v369 = vunpack.c.l.b16 %v152
    %v370 = vunpack.c.h.b16 %v152
    %v371 = vunpack.c.l.b16 %v153
    %v372 = vunpack.c.h.b16 %v153
    %v373 = vunpack.c.l.b16 %v154
    %v374 = vunpack.c.h.b16 %v154
    %v375 = vunpack.c.l.b16 %v155
    %v376 = vunpack.c.h.b16 %v155
    %v377 = vunpack.c.l.b16 %v156
    %v378 = vunpack.c.h.b16 %v156
    %v379 = vunpack.c.l.b16 %v157
    %v380 = vunpack.c.h.b16 %v157
    %v381 = vunpack.c.l.b16 %v158
    %v382 = vunpack.c.h.b16 %v158
    %v383 = vunpack.c.l.b16 %v159
    %v384 = vunpack.c.h.b16 %v159
    %v385 = vunpack.c.l.b16 %v160
    %v386 = vunpack.c.h.b16 %v160
    %v387 = vunpack.c.l.b16 %v161
    %v388 = vunpack.c.h.b16 %v161
    %v389 = vunpack.c.l.b16 %v162
    %v390 = vunpack.c.h.b16 %v162
    %v391 = vunpack.c.l.b16 %v163
    %v392 = vunpack.c.h.b16 %v163
    %v393 = vunpack.c.l.b16 %v164
    %v394 = vunpack.c.h.b16 %v164
    %v395 = vunpack.c.l.b16 %v165
    %v396 = vunpack.c.h.b16 %v165
    %v397 = vunpack.c.l.b16 %v166
    %v398 = vunpack.c.h.b16 %v166
    %v399 = vunpack.c.l.b16 %v167
    %v400 = vunpack.c.h.b16 %v167
    %v401 = vunpack.c.l.b16 %v168
    %v402 = vunpack.c.h.b16 %v168
    %v403 = vpack.c.b16 %v283, %v275
    %v404 = vpack.c.b16 %v284, %v276
    %v405 = vpack.c.b16 %v285, %v277
    %v406 = vpack.c.b16 %v286, %v278
    %v407 = vpack.c.b16 %v287, %v279
    %v408 = vpack.c.b16 %v288, %v280
    %v409 = vpack.c.b16 %v289, %v281
    %v410 = vpack.c.b16 %v290, %v282
    %v411 = vpack.c.b16 %v299, %v291
    %v412 = vpack.c.b16 %v300, %v292
    %v413 = vpack.c.b16 %v301, %v293
    %v414 = vpack.c.b16 %v302, %v294
    %v415 = vpack.c.b16 %v303, %v295
    %v416 = vpack.c.b16 %v304, %v296
    %v417 = vpack.c.b16 %v305, %v297
    %v418 = vpack.c.b16 %v306, %v298
    %v419 = vpack.c.b16 %v315, %v307
    %v420 = vpack.c.b16 %v316, %v308
    %v421 = vpack.c.b16 %v317, %v309
    %v422 = vpack.c.b16 %v318, %v310
    %v423 = vpack.c.b16 %v319, %v311
    %v424 = vpack.c.b16 %v320, %v312
    %v425 = vpack.c.b16 %v321, %v313
    %v426 = vpack.c.b16 %v322, %v314
    %v427 = vpack.c.b16 %v331, %v323
    %v428 = vpack.c.b16 %v332, %v324
    %v429 = vpack.c.b16 %v333, %v325
    %v430 = vpack.c.b16 %v334, %v326
    %v431 = vpack.c.b16 %v335, %v327
    %v432 = vpack.c.b16 %v336, %v328
    %v433 = vpack.c.b16 %v337, %v329
    %v434 = vpack.c.b16 %v338, %v330
    %v435 = vpack.c.b16 %v347, %v339
    %v436 = vpack.c.b16 %v348, %v340
    %v437 = vpack.c.b16 %v349, %v341
    %v438 = vpack.c.b16 %v350, %v342
    %v439 = vpack.c.b16 %v351, %v343
    %v440 = vpack.c.b16 %v352, %v344
    %v441 = vpack.c.b16 %v353, %v345
    %v442 = vpack.c.b16 %v354, %v346
    %v443 = vpack.c.b16 %v363, %v355
    %v444 = vpack.c.b16 %v364, %v356
    %v445 = vpack.c.b16 %v365, %v357
    %v446 = vpack.c.b16 %v366, %v358
    %v447 = vpack.c.b16 %v367, %v359
    %v448 = vpack.c.b16 %v368, %v360
    %v449 = vpack.c.b16 %v369, %v361
    %v450 = vpack.c.b16 %v370, %v362
    %v451 = vpack.c.b16 %v379, %v371
    %v452 = vpack.c.b16 %v380, %v372
    %v453 = vpack.c.b16 %v381, %v373
    %v454 = vpack.c.b16 %v382, %v374
    %v455 = vpack.c.b16 %v383, %v375
    %v456 = vpack.c.b16 %v384, %v376
    %v457 = vpack.c.b16 %v385, %v377
    %v458 = vpack.c.b16 %v386, %v378
    %v459 = vpack.c.b16 %v395, %v387
    %v460 = vpack.c.b16 %v396, %v388
    %v461 = vpack.c.b16 %v397, %v389
    %v462 = vpack.c.b16 %v398, %v390
    %v463 = vpack.c.b16 %v399, %v391
    %v464 = vpack.c.b16 %v400, %v392
    %v465 = vpack.c.b16 %v401, %v393
    %v466 = vpack.c.b16 %v402, %v394
    %531 = vmatprep.subr.bf16.mxu0 %v460
    %532 = vmatpush1.bf16.msra.mxu0 %v459
    %533 = vmatprep.subr.bf16.mxu0 %v452
    %534 = vmatpush1.bf16.msra.mxu0 %v451
    %535 = vmatprep.subr.bf16.mxu0 %v444
    %536 = vmatpush1.bf16.msra.mxu0 %v443
    %537 = vmatprep.subr.bf16.mxu0 %v436
    %538 = vmatpush1.bf16.msra.mxu0 %v435
    %539 = vmatprep.subr.bf16.mxu0 %v428
    %540 = vmatpush1.bf16.msra.mxu0 %v427
    %541 = vmatprep.subr.bf16.mxu0 %v420
    %542 = vmatpush1.bf16.msra.mxu0 %v419
    %543 = vmatprep.subr.bf16.mxu0 %v412
    %544 = vmatpush1.bf16.msra.mxu0 %v411
    %545 = vmatprep.subr.bf16.mxu0 %v404
    %546 = vmatpush1.bf16.msra.mxu0 %v403
    %547 = vmatprep.subr.bf16.mxu0 0
    %548 = vmatpush2.bf16.msra.mxu0 0
    %549 = vmatprep.subr.bf16.mxu0 0
    %550 = vmatpush2.bf16.msra.mxu0 0
    %551 = vmatprep.subr.bf16.mxu0 0
    %552 = vmatpush2.bf16.msra.mxu0 0
    %553 = vmatprep.subr.bf16.mxu0 0
    %554 = vmatpush2.bf16.msra.mxu0 0
    %555 = vmatprep.subr.bf16.mxu0 0
    %556 = vmatpush2.bf16.msra.mxu0 0
    %557 = vmatprep.subr.bf16.mxu0 0
    %558 = vmatpush2.bf16.msra.mxu0 0
    %559 = vmatprep.subr.bf16.mxu0 0
    %560 = vmatpush2.bf16.msra.mxu0 0
    %561 = vmatprep.subr.bf16.mxu0 0
    %562 = vmatpush2.bf16.msra.mxu0 0
    %563 = vmatprep.mubr.bf16.mxu0 0
    %564 = vmatmul.mubr.bf16.gmra.mxu0 %v104
    %v565 = vpop.f32.mrf.mxu0
    %v566 = vadd.f32 %v174, %v565
    %v567 = vpop.f32.mrf.mxu0
    %v568 = vadd.f32 %v178, %v567
    %v569 = vpop.f32.mrf.mxu0
    %v570 = vpop.f32.mrf.mxu0
    %571 = vdwg.mxu0
    %572 = vmatprep.subr.bf16.mxu0 %v462
    %573 = vmatpush1.bf16.msra.mxu0 %v461
    %574 = vmatprep.subr.bf16.mxu0 %v454
    %575 = vmatpush1.bf16.msra.mxu0 %v453
    %576 = vmatprep.subr.bf16.mxu0 %v446
    %577 = vmatpush1.bf16.msra.mxu0 %v445
    %578 = vmatprep.subr.bf16.mxu0 %v438
    %579 = vmatpush1.bf16.msra.mxu0 %v437
    %580 = vmatprep.subr.bf16.mxu0 %v430
    %581 = vmatpush1.bf16.msra.mxu0 %v429
    %582 = vmatprep.subr.bf16.mxu0 %v422
    %583 = vmatpush1.bf16.msra.mxu0 %v421
    %584 = vmatprep.subr.bf16.mxu0 %v414
    %585 = vmatpush1.bf16.msra.mxu0 %v413
    %586 = vmatprep.subr.bf16.mxu0 %v406
    %587 = vmatpush1.bf16.msra.mxu0 %v405
    %588 = vmatprep.subr.bf16.mxu0 0
    %589 = vmatpush2.bf16.msra.mxu0 0
    %590 = vmatprep.subr.bf16.mxu0 0
    %591 = vmatpush2.bf16.msra.mxu0 0
    %592 = vmatprep.subr.bf16.mxu0 0
    %593 = vmatpush2.bf16.msra.mxu0 0
    %594 = vmatprep.subr.bf16.mxu0 0
    %595 = vmatpush2.bf16.msra.mxu0 0
    %596 = vmatprep.subr.bf16.mxu0 0
    %597 = vmatpush2.bf16.msra.mxu0 0
    %598 = vmatprep.subr.bf16.mxu0 0
    %599 = vmatpush2.bf16.msra.mxu0 0
    %600 = vmatprep.subr.bf16.mxu0 0
    %601 = vmatpush2.bf16.msra.mxu0 0
    %602 = vmatprep.subr.bf16.mxu0 0
    %603 = vmatpush2.bf16.msra.mxu0 0
    %604 = vmatprep.mubr.bf16.mxu0 0
    %605 = vmatmul.mubr.bf16.gmra.mxu0 %v104
    %v606 = vpop.f32.mrf.mxu0
    %v607 = vadd.f32 %v182, %v606
    %v608 = vpop.f32.mrf.mxu0
    %v609 = vadd.f32 %v186, %v608
    %v610 = vpop.f32.mrf.mxu0
    %v611 = vpop.f32.mrf.mxu0
    %612 = vdwg.mxu0
    %613 = vmatprep.subr.bf16.mxu0 %v464
    %614 = vmatpush1.bf16.msra.mxu0 %v463
    %615 = vmatprep.subr.bf16.mxu0 %v456
    %616 = vmatpush1.bf16.msra.mxu0 %v455
    %617 = vmatprep.subr.bf16.mxu0 %v448
    %618 = vmatpush1.bf16.msra.mxu0 %v447
    %619 = vmatprep.subr.bf16.mxu0 %v440
    %620 = vmatpush1.bf16.msra.mxu0 %v439
    %621 = vmatprep.subr.bf16.mxu0 %v432
    %622 = vmatpush1.bf16.msra.mxu0 %v431
    %623 = vmatprep.subr.bf16.mxu0 %v424
    %624 = vmatpush1.bf16.msra.mxu0 %v423
    %625 = vmatprep.subr.bf16.mxu0 %v416
    %626 = vmatpush1.bf16.msra.mxu0 %v415
    %627 = vmatprep.subr.bf16.mxu0 %v408
    %628 = vmatpush1.bf16.msra.mxu0 %v407
    %629 = vmatprep.subr.bf16.mxu0 0
    %630 = vmatpush2.bf16.msra.mxu0 0
    %631 = vmatprep.subr.bf16.mxu0 0
    %632 = vmatpush2.bf16.msra.mxu0 0
    %633 = vmatprep.subr.bf16.mxu0 0
    %634 = vmatpush2.bf16.msra.mxu0 0
    %635 = vmatprep.subr.bf16.mxu0 0
    %636 = vmatpush2.bf16.msra.mxu0 0
    %637 = vmatprep.subr.bf16.mxu0 0
    %638 = vmatpush2.bf16.msra.mxu0 0
    %639 = vmatprep.subr.bf16.mxu0 0
    %640 = vmatpush2.bf16.msra.mxu0 0
    %641 = vmatprep.subr.bf16.mxu0 0
    %642 = vmatpush2.bf16.msra.mxu0 0
    %643 = vmatprep.subr.bf16.mxu0 0
    %644 = vmatpush2.bf16.msra.mxu0 0
    %645 = vmatprep.mubr.bf16.mxu0 0
    %646 = vmatmul.mubr.bf16.gmra.mxu0 %v104
    %v647 = vpop.f32.mrf.mxu0
    %v648 = vadd.f32 %v190, %v647
    %v649 = vpop.f32.mrf.mxu0
    %v650 = vadd.f32 %v194, %v649
    %v651 = vpop.f32.mrf.mxu0
    %v652 = vpop.f32.mrf.mxu0
    %653 = vdwg.mxu0
    %654 = vmatprep.subr.bf16.mxu0 %v466
    %655 = vmatpush1.bf16.msra.mxu0 %v465
    %656 = vmatprep.subr.bf16.mxu0 %v458
    %657 = vmatpush1.bf16.msra.mxu0 %v457
    %658 = vmatprep.subr.bf16.mxu0 %v450
    %659 = vmatpush1.bf16.msra.mxu0 %v449
    %660 = vmatprep.subr.bf16.mxu0 %v442
    %661 = vmatpush1.bf16.msra.mxu0 %v441
    %662 = vmatprep.subr.bf16.mxu0 %v434
    %663 = vmatpush1.bf16.msra.mxu0 %v433
    %664 = vmatprep.subr.bf16.mxu0 %v426
    %665 = vmatpush1.bf16.msra.mxu0 %v425
    %666 = vmatprep.subr.bf16.mxu0 %v418
    %667 = vmatpush1.bf16.msra.mxu0 %v417
    %668 = vmatprep.subr.bf16.mxu0 %v410
    %669 = vmatpush1.bf16.msra.mxu0 %v409
    %670 = vmatprep.subr.bf16.mxu0 0
    %671 = vmatpush2.bf16.msra.mxu0 0
    %672 = vmatprep.subr.bf16.mxu0 0
    %673 = vmatpush2.bf16.msra.mxu0 0
    %674 = vmatprep.subr.bf16.mxu0 0
    %675 = vmatpush2.bf16.msra.mxu0 0
    %676 = vmatprep.subr.bf16.mxu0 0
    %677 = vmatpush2.bf16.msra.mxu0 0
    %678 = vmatprep.subr.bf16.mxu0 0
    %679 = vmatpush2.bf16.msra.mxu0 0
    %680 = vmatprep.subr.bf16.mxu0 0
    %681 = vmatpush2.bf16.msra.mxu0 0
    %682 = vmatprep.subr.bf16.mxu0 0
    %683 = vmatpush2.bf16.msra.mxu0 0
    %684 = vmatprep.subr.bf16.mxu0 0
    %685 = vmatpush2.bf16.msra.mxu0 0
    %686 = vmatprep.mubr.bf16.mxu0 0
    %687 = vmatmul.mubr.bf16.gmra.mxu0 %v104
    %v688 = vpop.f32.mrf.mxu0
    %v689 = vadd.f32 %v198, %v688
    %v690 = vpop.f32.mrf.mxu0
    %v691 = vadd.f32 %v202, %v690
    %v692 = vpop.f32.mrf.mxu0
    %v693 = vpop.f32.mrf.mxu0
    %694 = vdwg.mxu0
    %vm695 = vcmp.gt.f32.partialorder %v566, 0.0
    %vm696 = vcmp.gt.f32.partialorder %v568, 0.0
    %vm697 = vcmp.gt.f32.partialorder %v607, 0.0
    %vm698 = vcmp.gt.f32.partialorder %v609, 0.0
    %vm699 = vcmp.gt.f32.partialorder %v648, 0.0
    %vm700 = vcmp.gt.f32.partialorder %v650, 0.0
    %vm701 = vcmp.gt.f32.partialorder %v689, 0.0
    %vm702 = vcmp.gt.f32.partialorder %v691, 0.0
    %v703 = vmul.f32 %v566, 0.01
    %v704 = vmul.f32 %v568, 0.01
    %v705 = vmul.f32 %v607, 0.01
    %v706 = vmul.f32 %v609, 0.01
    %v707 = vmul.f32 %v648, 0.01
    %v708 = vmul.f32 %v650, 0.01
    %v709 = vmul.f32 %v689, 0.01
    %v710 = vmul.f32 %v691, 0.01
    %v711 = vsel %vm695, %v566, %v703
    %v712 = vsel %vm696, %v568, %v704
    %v713 = vsel %vm697, %v607, %v705
    %v714 = vsel %vm698, %v609, %v706
    %v715 = vsel %vm699, %v648, %v707
    %v716 = vsel %vm700, %v650, %v708
    %v717 = vsel %vm701, %v689, %v709
    %v718 = vsel %vm702, %v691, %v710
    %s719 = sld [smem:[#allocation2]]
    %s720 = sld [smem:[#allocation2 + $0x1]]
    %v721 = vadd.f32 %v711, %v712
    %v722 = vadd.f32 %v721, %v713
    %v723 = vadd.f32 %v722, %v714
    %v724 = vadd.f32 %v723, %v715
    %v725 = vadd.f32 %v724, %v716
    %v726 = vadd.f32 %v725, %v717
    %v727 = vadd.f32 %v726, %v718
    %728 = vadd.xlane.f32.xlu0 %v727
    %v729 = vpop.xlane.xlu0 %728
    %v730 = vrot.slane %v729, 4
    %v731 = vadd.f32 %v729, %v730
    %v732 = vrot.slane %v731, 2
    %v733 = vadd.f32 %v731, %v732
    %v734 = vrot.slane %v733, 1
    %v735 = vadd.f32 %v733, %v734
    %s736 = vtos %v735
    %v737 = vmul.f32 %v711, %v711
    %v738 = vmul.f32 %v712, %v712
    %v739 = vmul.f32 %v713, %v713
    %v740 = vmul.f32 %v714, %v714
    %v741 = vmul.f32 %v715, %v715
    %v742 = vmul.f32 %v716, %v716
    %v743 = vmul.f32 %v717, %v717
    %v744 = vmul.f32 %v718, %v718
    %v745 = vadd.f32 %v737, %v738
    %v746 = vadd.f32 %v745, %v739
    %v747 = vadd.f32 %v746, %v740
    %v748 = vadd.f32 %v747, %v741
    %v749 = vadd.f32 %v748, %v742
    %v750 = vadd.f32 %v749, %v743
    %v751 = vadd.f32 %v750, %v744
    %752 = vadd.xlane.f32.xlu0 %v751
    %v753 = vpop.xlane.xlu0 %752
    %v754 = vrot.slane %v753, 4
    %v755 = vadd.f32 %v753, %v754
    %v756 = vrot.slane %v755, 2
    %v757 = vadd.f32 %v755, %v756
    %v758 = vrot.slane %v757, 1
    %v759 = vadd.f32 %v757, %v758
    %s760 = vtos %v759
    %v761 = vrcp.pop 8192.0
    %s762 = vtos %v761
    %s763 = smul.f32 %s736, %s762
    %v764 = vrcp.pop 8192.0
    %s765 = vtos %v764
    %s766 = smul.f32 %s760, %s765
    %s767 = smul.f32 %s763, %s763
    %s768 = ssub.f32 %s766, %s767
    %s769 = smax.f32 %s768, 0.0
    %s770 = sadd.f32 %s769, 1e-05
    %v771 = vstv %s770
    %v772 = vrsqrt.pop %v771
    %s773 = vtos %v772
    %s774 = smul.f32 %s773, %s719
    %v775 = vstv %s763
    %v776 = vsub.f32 %v711, %v775
    %v777 = vsub.f32 %v712, %v775
    %v778 = vsub.f32 %v713, %v775
    %v779 = vsub.f32 %v714, %v775
    %v780 = vsub.f32 %v715, %v775
    %v781 = vsub.f32 %v716, %v775
    %v782 = vsub.f32 %v717, %v775
    %v783 = vsub.f32 %v718, %v775
    %v784 = vstv %s774
    %v785 = vmul.f32 %v776, %v784
    %v786 = vmul.f32 %v777, %v784
    %v787 = vmul.f32 %v778, %v784
    %v788 = vmul.f32 %v779, %v784
    %v789 = vmul.f32 %v780, %v784
    %v790 = vmul.f32 %v781, %v784
    %v791 = vmul.f32 %v782, %v784
    %v792 = vmul.f32 %v783, %v784
    %v793 = vstv %s720
    %v794 = vadd.f32 %v785, %v793
    %v795 = vadd.f32 %v786, %v793
    %v796 = vadd.f32 %v787, %v793
    %v797 = vadd.f32 %v788, %v793
    %v798 = vadd.f32 %v789, %v793
    %v799 = vadd.f32 %v790, %v793
    %v800 = vadd.f32 %v791, %v793
    %v801 = vadd.f32 %v792, %v793
    %v802 = vpack.c.bf16 %v794, %v794
    %v803 = vpack.c.bf16 %v795, %v795
    %v804 = vpack.c.bf16 %v796, %v796
    %v805 = vpack.c.bf16 %v797, %v797
    %v806 = vpack.c.bf16 %v798, %v798
    %v807 = vpack.c.bf16 %v799, %v799
    %v808 = vpack.c.bf16 %v800, %v800
    %v809 = vpack.c.bf16 %v801, %v801
    %v810 = vld [vmem:[#allocation7] sm:$0xf]
    %v811 = vld [vmem:[#allocation7 + $0x4] sm:$0xf]
    %v812 = vld [vmem:[#allocation7 + $0x8] sm:$0xf]
    %v813 = vld [vmem:[#allocation7 + $0xc] sm:$0xf]
    %v814 = vld [vmem:[#allocation7 + $0x10] sm:$0xf]
    %v815 = vld [vmem:[#allocation7 + $0x14] sm:$0xf]
    %v816 = vld [vmem:[#allocation7 + $0x18] sm:$0xf]
    %v817 = vld [vmem:[#allocation7 + $0x1c] sm:$0xf]
    %v818 = vld [vmem:[#allocation7 + $0x20] sm:$0xf]
    %v819 = vld [vmem:[#allocation7 + $0x24] sm:$0xf]
    %v820 = vld [vmem:[#allocation7 + $0x28] sm:$0xf]
    %v821 = vld [vmem:[#allocation7 + $0x2c] sm:$0xf]
    %v822 = vld [vmem:[#allocation7 + $0x30] sm:$0xf]
    %v823 = vld [vmem:[#allocation7 + $0x34] sm:$0xf]
    %v824 = vld [vmem:[#allocation7 + $0x38] sm:$0xf]
    %v825 = vld [vmem:[#allocation7 + $0x3c] sm:$0xf]
    %v826 = vld [vmem:[#allocation7 + $0x40] sm:$0xf]
    %v827 = vld [vmem:[#allocation7 + $0x44] sm:$0xf]
    %v828 = vld [vmem:[#allocation7 + $0x48] sm:$0xf]
    %v829 = vld [vmem:[#allocation7 + $0x4c] sm:$0xf]
    %v830 = vld [vmem:[#allocation7 + $0x50] sm:$0xf]
    %v831 = vld [vmem:[#allocation7 + $0x54] sm:$0xf]
    %v832 = vld [vmem:[#allocation7 + $0x58] sm:$0xf]
    %v833 = vld [vmem:[#allocation7 + $0x5c] sm:$0xf]
    %v834 = vld [vmem:[#allocation7 + $0x60] sm:$0xf]
    %v835 = vld [vmem:[#allocation7 + $0x64] sm:$0xf]
    %v836 = vld [vmem:[#allocation7 + $0x68] sm:$0xf]
    %v837 = vld [vmem:[#allocation7 + $0x6c] sm:$0xf]
    %v838 = vld [vmem:[#allocation7 + $0x70] sm:$0xf]
    %v839 = vld [vmem:[#allocation7 + $0x74] sm:$0xf]
    %v840 = vld [vmem:[#allocation7 + $0x78] sm:$0xf]
    %v841 = vld [vmem:[#allocation7 + $0x7c] sm:$0xf]
    %v842 = vld [vmem:[#allocation7 + $0x80] sm:$0xf]
    %v843 = vld [vmem:[#allocation7 + $0x84] sm:$0xf]
    %v844 = vld [vmem:[#allocation7 + $0x88] sm:$0xf]
    %v845 = vld [vmem:[#allocation7 + $0x8c] sm:$0xf]
    %v846 = vld [vmem:[#allocation7 + $0x90] sm:$0xf]
    %v847 = vld [vmem:[#allocation7 + $0x94] sm:$0xf]
    %v848 = vld [vmem:[#allocation7 + $0x98] sm:$0xf]
    %v849 = vld [vmem:[#allocation7 + $0x9c] sm:$0xf]
    %v850 = vld [vmem:[#allocation7 + $0xa0] sm:$0xf]
    %v851 = vld [vmem:[#allocation7 + $0xa4] sm:$0xf]
    %v852 = vld [vmem:[#allocation7 + $0xa8] sm:$0xf]
    %v853 = vld [vmem:[#allocation7 + $0xac] sm:$0xf]
    %v854 = vld [vmem:[#allocation7 + $0xb0] sm:$0xf]
    %v855 = vld [vmem:[#allocation7 + $0xb4] sm:$0xf]
    %v856 = vld [vmem:[#allocation7 + $0xb8] sm:$0xf]
    %v857 = vld [vmem:[#allocation7 + $0xbc] sm:$0xf]
    %v858 = vld [vmem:[#allocation7 + $0xc0] sm:$0xf]
    %v859 = vld [vmem:[#allocation7 + $0xc4] sm:$0xf]
    %v860 = vld [vmem:[#allocation7 + $0xc8] sm:$0xf]
    %v861 = vld [vmem:[#allocation7 + $0xcc] sm:$0xf]
    %v862 = vld [vmem:[#allocation7 + $0xd0] sm:$0xf]
    %v863 = vld [vmem:[#allocation7 + $0xd4] sm:$0xf]
    %v864 = vld [vmem:[#allocation7 + $0xd8] sm:$0xf]
    %v865 = vld [vmem:[#allocation7 + $0xdc] sm:$0xf]
    %v866 = vld [vmem:[#allocation7 + $0xe0] sm:$0xf]
    %v867 = vld [vmem:[#allocation7 + $0xe4] sm:$0xf]
    %v868 = vld [vmem:[#allocation7 + $0xe8] sm:$0xf]
    %v869 = vld [vmem:[#allocation7 + $0xec] sm:$0xf]
    %v870 = vld [vmem:[#allocation7 + $0xf0] sm:$0xf]
    %v871 = vld [vmem:[#allocation7 + $0xf4] sm:$0xf]
    %v872 = vld [vmem:[#allocation7 + $0xf8] sm:$0xf]
    %v873 = vld [vmem:[#allocation7 + $0xfc] sm:$0xf]
    %v874 = vld [vmem:[#allocation7 + $0x100] sm:$0xf]
    %v875 = vld [vmem:[#allocation7 + $0x104] sm:$0xf]
    %v876 = vld [vmem:[#allocation7 + $0x108] sm:$0xf]
    %v877 = vld [vmem:[#allocation7 + $0x10c] sm:$0xf]
    %v878 = vld [vmem:[#allocation7 + $0x110] sm:$0xf]
    %v879 = vld [vmem:[#allocation7 + $0x114] sm:$0xf]
    %v880 = vld [vmem:[#allocation7 + $0x118] sm:$0xf]
    %v881 = vld [vmem:[#allocation7 + $0x11c] sm:$0xf]
    %v882 = vld [vmem:[#allocation7 + $0x120] sm:$0xf]
    %v883 = vld [vmem:[#allocation7 + $0x124] sm:$0xf]
    %v884 = vld [vmem:[#allocation7 + $0x128] sm:$0xf]
    %v885 = vld [vmem:[#allocation7 + $0x12c] sm:$0xf]
    %v886 = vld [vmem:[#allocation7 + $0x130] sm:$0xf]
    %v887 = vld [vmem:[#allocation7 + $0x134] sm:$0xf]
    %v888 = vld [vmem:[#allocation7 + $0x138] sm:$0xf]
    %v889 = vld [vmem:[#allocation7 + $0x13c] sm:$0xf]
    %v890 = vld [vmem:[#allocation7 + $0x140] sm:$0xf]
    %v891 = vld [vmem:[#allocation7 + $0x144] sm:$0xf]
    %v892 = vld [vmem:[#allocation7 + $0x148] sm:$0xf]
    %v893 = vld [vmem:[#allocation7 + $0x14c] sm:$0xf]
    %v894 = vld [vmem:[#allocation7 + $0x150] sm:$0xf]
    %v895 = vld [vmem:[#allocation7 + $0x154] sm:$0xf]
    %v896 = vld [vmem:[#allocation7 + $0x158] sm:$0xf]
    %v897 = vld [vmem:[#allocation7 + $0x15c] sm:$0xf]
    %v898 = vld [vmem:[#allocation7 + $0x160] sm:$0xf]
    %v899 = vld [vmem:[#allocation7 + $0x164] sm:$0xf]
    %v900 = vld [vmem:[#allocation7 + $0x168] sm:$0xf]
    %v901 = vld [vmem:[#allocation7 + $0x16c] sm:$0xf]
    %v902 = vld [vmem:[#allocation7 + $0x170] sm:$0xf]
    %v903 = vld [vmem:[#allocation7 + $0x174] sm:$0xf]
    %v904 = vld [vmem:[#allocation7 + $0x178] sm:$0xf]
    %v905 = vld [vmem:[#allocation7 + $0x17c] sm:$0xf]
    %v906 = vld [vmem:[#allocation7 + $0x180] sm:$0xf]
    %v907 = vld [vmem:[#allocation7 + $0x184] sm:$0xf]
    %v908 = vld [vmem:[#allocation7 + $0x188] sm:$0xf]
    %v909 = vld [vmem:[#allocation7 + $0x18c] sm:$0xf]
    %v910 = vld [vmem:[#allocation7 + $0x190] sm:$0xf]
    %v911 = vld [vmem:[#allocation7 + $0x194] sm:$0xf]
    %v912 = vld [vmem:[#allocation7 + $0x198] sm:$0xf]
    %v913 = vld [vmem:[#allocation7 + $0x19c] sm:$0xf]
    %v914 = vld [vmem:[#allocation7 + $0x1a0] sm:$0xf]
    %v915 = vld [vmem:[#allocation7 + $0x1a4] sm:$0xf]
    %v916 = vld [vmem:[#allocation7 + $0x1a8] sm:$0xf]
    %v917 = vld [vmem:[#allocation7 + $0x1ac] sm:$0xf]
    %v918 = vld [vmem:[#allocation7 + $0x1b0] sm:$0xf]
    %v919 = vld [vmem:[#allocation7 + $0x1b4] sm:$0xf]
    %v920 = vld [vmem:[#allocation7 + $0x1b8] sm:$0xf]
    %v921 = vld [vmem:[#allocation7 + $0x1bc] sm:$0xf]
    %v922 = vld [vmem:[#allocation7 + $0x1c0] sm:$0xf]
    %v923 = vld [vmem:[#allocation7 + $0x1c4] sm:$0xf]
    %v924 = vld [vmem:[#allocation7 + $0x1c8] sm:$0xf]
    %v925 = vld [vmem:[#allocation7 + $0x1cc] sm:$0xf]
    %v926 = vld [vmem:[#allocation7 + $0x1d0] sm:$0xf]
    %v927 = vld [vmem:[#allocation7 + $0x1d4] sm:$0xf]
    %v928 = vld [vmem:[#allocation7 + $0x1d8] sm:$0xf]
    %v929 = vld [vmem:[#allocation7 + $0x1dc] sm:$0xf]
    %v930 = vld [vmem:[#allocation7 + $0x1e0] sm:$0xf]
    %v931 = vld [vmem:[#allocation7 + $0x1e4] sm:$0xf]
    %v932 = vld [vmem:[#allocation7 + $0x1e8] sm:$0xf]
    %v933 = vld [vmem:[#allocation7 + $0x1ec] sm:$0xf]
    %v934 = vld [vmem:[#allocation7 + $0x1f0] sm:$0xf]
    %v935 = vld [vmem:[#allocation7 + $0x1f4] sm:$0xf]
    %v936 = vld [vmem:[#allocation7 + $0x1f8] sm:$0xf]
    %v937 = vld [vmem:[#allocation7 + $0x1fc] sm:$0xf]
    %v938 = vld [vmem:[%s5] sm:$0x1]
    %v940 = vlaneseq
    %v941 = vshrl.u32 %v940, 7
    %v942 = vsub.s32 0, %v941
    %v943 = vrot.slane %v938, %v942
    %v1073 = vunpack.c.l.b16 %v810
    %v1074 = vunpack.c.l.b16 %v811
    %v1075 = vunpack.c.l.b16 %v812
    %v1076 = vunpack.c.l.b16 %v813
    %v1077 = vunpack.c.l.b16 %v814
    %v1078 = vunpack.c.l.b16 %v815
    %v1079 = vunpack.c.l.b16 %v816
    %v1080 = vunpack.c.l.b16 %v817
    %v1081 = vunpack.c.l.b16 %v818
    %v1082 = vunpack.c.l.b16 %v819
    %v1083 = vunpack.c.l.b16 %v820
    %v1084 = vunpack.c.l.b16 %v821
    %v1085 = vunpack.c.l.b16 %v822
    %v1086 = vunpack.c.l.b16 %v823
    %v1087 = vunpack.c.l.b16 %v824
    %v1088 = vunpack.c.l.b16 %v825
    %v1089 = vunpack.c.l.b16 %v826
    %v1090 = vunpack.c.l.b16 %v827
    %v1091 = vunpack.c.l.b16 %v828
    %v1092 = vunpack.c.l.b16 %v829
    %v1093 = vunpack.c.l.b16 %v830
    %v1094 = vunpack.c.l.b16 %v831
    %v1095 = vunpack.c.l.b16 %v832
    %v1096 = vunpack.c.l.b16 %v833
    %v1097 = vunpack.c.l.b16 %v834
    %v1098 = vunpack.c.l.b16 %v835
    %v1099 = vunpack.c.l.b16 %v836
    %v1100 = vunpack.c.l.b16 %v837
    %v1101 = vunpack.c.l.b16 %v838
    %v1102 = vunpack.c.l.b16 %v839
    %v1103 = vunpack.c.l.b16 %v840
    %v1104 = vunpack.c.l.b16 %v841
    %v1105 = vunpack.c.l.b16 %v842
    %v1106 = vunpack.c.l.b16 %v843
    %v1107 = vunpack.c.l.b16 %v844
    %v1108 = vunpack.c.l.b16 %v845
    %v1109 = vunpack.c.l.b16 %v846
    %v1110 = vunpack.c.l.b16 %v847
    %v1111 = vunpack.c.l.b16 %v848
    %v1112 = vunpack.c.l.b16 %v849
    %v1113 = vunpack.c.l.b16 %v850
    %v1114 = vunpack.c.l.b16 %v851
    %v1115 = vunpack.c.l.b16 %v852
    %v1116 = vunpack.c.l.b16 %v853
    %v1117 = vunpack.c.l.b16 %v854
    %v1118 = vunpack.c.l.b16 %v855
    %v1119 = vunpack.c.l.b16 %v856
    %v1120 = vunpack.c.l.b16 %v857
    %v1121 = vunpack.c.l.b16 %v858
    %v1122 = vunpack.c.l.b16 %v859
    %v1123 = vunpack.c.l.b16 %v860
    %v1124 = vunpack.c.l.b16 %v861
    %v1125 = vunpack.c.l.b16 %v862
    %v1126 = vunpack.c.l.b16 %v863
    %v1127 = vunpack.c.l.b16 %v864
    %v1128 = vunpack.c.l.b16 %v865
    %v1129 = vunpack.c.l.b16 %v866
    %v1130 = vunpack.c.l.b16 %v867
    %v1131 = vunpack.c.l.b16 %v868
    %v1132 = vunpack.c.l.b16 %v869
    %v1133 = vunpack.c.l.b16 %v870
    %v1134 = vunpack.c.l.b16 %v871
    %v1135 = vunpack.c.l.b16 %v872
    %v1136 = vunpack.c.l.b16 %v873
    %v1137 = vunpack.c.l.b16 %v874
    %v1138 = vunpack.c.l.b16 %v875
    %v1139 = vunpack.c.l.b16 %v876
    %v1140 = vunpack.c.l.b16 %v877
    %v1141 = vunpack.c.l.b16 %v878
    %v1142 = vunpack.c.l.b16 %v879
    %v1143 = vunpack.c.l.b16 %v880
    %v1144 = vunpack.c.l.b16 %v881
    %v1145 = vunpack.c.l.b16 %v882
    %v1146 = vunpack.c.l.b16 %v883
    %v1147 = vunpack.c.l.b16 %v884
    %v1148 = vunpack.c.l.b16 %v885
    %v1149 = vunpack.c.l.b16 %v886
    %v1150 = vunpack.c.l.b16 %v887
    %v1151 = vunpack.c.l.b16 %v888
    %v1152 = vunpack.c.l.b16 %v889
    %v1153 = vunpack.c.l.b16 %v890
    %v1154 = vunpack.c.l.b16 %v891
    %v1155 = vunpack.c.l.b16 %v892
    %v1156 = vunpack.c.l.b16 %v893
    %v1157 = vunpack.c.l.b16 %v894
    %v1158 = vunpack.c.l.b16 %v895
    %v1159 = vunpack.c.l.b16 %v896
    %v1160 = vunpack.c.l.b16 %v897
    %v1161 = vunpack.c.l.b16 %v898
    %v1162 = vunpack.c.l.b16 %v899
    %v1163 = vunpack.c.l.b16 %v900
    %v1164 = vunpack.c.l.b16 %v901
    %v1165 = vunpack.c.l.b16 %v902
    %v1166 = vunpack.c.l.b16 %v903
    %v1167 = vunpack.c.l.b16 %v904
    %v1168 = vunpack.c.l.b16 %v905
    %v1169 = vunpack.c.l.b16 %v906
    %v1170 = vunpack.c.l.b16 %v907
    %v1171 = vunpack.c.l.b16 %v908
    %v1172 = vunpack.c.l.b16 %v909
    %v1173 = vunpack.c.l.b16 %v910
    %v1174 = vunpack.c.l.b16 %v911
    %v1175 = vunpack.c.l.b16 %v912
    %v1176 = vunpack.c.l.b16 %v913
    %v1177 = vunpack.c.l.b16 %v914
    %v1178 = vunpack.c.l.b16 %v915
    %v1179 = vunpack.c.l.b16 %v916
    %v1180 = vunpack.c.l.b16 %v917
    %v1181 = vunpack.c.l.b16 %v918
    %v1182 = vunpack.c.l.b16 %v919
    %v1183 = vunpack.c.l.b16 %v920
    %v1184 = vunpack.c.l.b16 %v921
    %v1185 = vunpack.c.l.b16 %v922
    %v1186 = vunpack.c.l.b16 %v923
    %v1187 = vunpack.c.l.b16 %v924
    %v1188 = vunpack.c.l.b16 %v925
    %v1189 = vunpack.c.l.b16 %v926
    %v1190 = vunpack.c.l.b16 %v927
    %v1191 = vunpack.c.l.b16 %v928
    %v1192 = vunpack.c.l.b16 %v929
    %v1193 = vunpack.c.l.b16 %v930
    %v1194 = vunpack.c.l.b16 %v931
    %v1195 = vunpack.c.l.b16 %v932
    %v1196 = vunpack.c.l.b16 %v933
    %v1197 = vunpack.c.l.b16 %v934
    %v1198 = vunpack.c.l.b16 %v935
    %v1199 = vunpack.c.l.b16 %v936
    %v1200 = vunpack.c.l.b16 %v937
    %v1201 = vpack.c.b16 %v1074, %v1073
    %v1202 = vpack.c.b16 %v1076, %v1075
    %v1203 = vpack.c.b16 %v1078, %v1077
    %v1204 = vpack.c.b16 %v1080, %v1079
    %v1205 = vpack.c.b16 %v1082, %v1081
    %v1206 = vpack.c.b16 %v1084, %v1083
    %v1207 = vpack.c.b16 %v1086, %v1085
    %v1208 = vpack.c.b16 %v1088, %v1087
    %v1209 = vpack.c.b16 %v1090, %v1089
    %v1210 = vpack.c.b16 %v1092, %v1091
    %v1211 = vpack.c.b16 %v1094, %v1093
    %v1212 = vpack.c.b16 %v1096, %v1095
    %v1213 = vpack.c.b16 %v1098, %v1097
    %v1214 = vpack.c.b16 %v1100, %v1099
    %v1215 = vpack.c.b16 %v1102, %v1101
    %v1216 = vpack.c.b16 %v1104, %v1103
    %v1217 = vpack.c.b16 %v1106, %v1105
    %v1218 = vpack.c.b16 %v1108, %v1107
    %v1219 = vpack.c.b16 %v1110, %v1109
    %v1220 = vpack.c.b16 %v1112, %v1111
    %v1221 = vpack.c.b16 %v1114, %v1113
    %v1222 = vpack.c.b16 %v1116, %v1115
    %v1223 = vpack.c.b16 %v1118, %v1117
    %v1224 = vpack.c.b16 %v1120, %v1119
    %v1225 = vpack.c.b16 %v1122, %v1121
    %v1226 = vpack.c.b16 %v1124, %v1123
    %v1227 = vpack.c.b16 %v1126, %v1125
    %v1228 = vpack.c.b16 %v1128, %v1127
    %v1229 = vpack.c.b16 %v1130, %v1129
    %v1230 = vpack.c.b16 %v1132, %v1131
    %v1231 = vpack.c.b16 %v1134, %v1133
    %v1232 = vpack.c.b16 %v1136, %v1135
    %v1233 = vpack.c.b16 %v1138, %v1137
    %v1234 = vpack.c.b16 %v1140, %v1139
    %v1235 = vpack.c.b16 %v1142, %v1141
    %v1236 = vpack.c.b16 %v1144, %v1143
    %v1237 = vpack.c.b16 %v1146, %v1145
    %v1238 = vpack.c.b16 %v1148, %v1147
    %v1239 = vpack.c.b16 %v1150, %v1149
    %v1240 = vpack.c.b16 %v1152, %v1151
    %v1241 = vpack.c.b16 %v1154, %v1153
    %v1242 = vpack.c.b16 %v1156, %v1155
    %v1243 = vpack.c.b16 %v1158, %v1157
    %v1244 = vpack.c.b16 %v1160, %v1159
    %v1245 = vpack.c.b16 %v1162, %v1161
    %v1246 = vpack.c.b16 %v1164, %v1163
    %v1247 = vpack.c.b16 %v1166, %v1165
    %v1248 = vpack.c.b16 %v1168, %v1167
    %v1249 = vpack.c.b16 %v1170, %v1169
    %v1250 = vpack.c.b16 %v1172, %v1171
    %v1251 = vpack.c.b16 %v1174, %v1173
    %v1252 = vpack.c.b16 %v1176, %v1175
    %v1253 = vpack.c.b16 %v1178, %v1177
    %v1254 = vpack.c.b16 %v1180, %v1179
    %v1255 = vpack.c.b16 %v1182, %v1181
    %v1256 = vpack.c.b16 %v1184, %v1183
    %v1257 = vpack.c.b16 %v1186, %v1185
    %v1258 = vpack.c.b16 %v1188, %v1187
    %v1259 = vpack.c.b16 %v1190, %v1189
    %v1260 = vpack.c.b16 %v1192, %v1191
    %v1261 = vpack.c.b16 %v1194, %v1193
    %v1262 = vpack.c.b16 %v1196, %v1195
    %v1263 = vpack.c.b16 %v1198, %v1197
    %v1264 = vpack.c.b16 %v1200, %v1199
    %1329 = vmatprep.subr.bf16.mxu0 0
    %1330 = vmatpush1.bf16.msra.mxu0 %v1208
    %1331 = vmatprep.subr.bf16.mxu0 0
    %1332 = vmatpush1.bf16.msra.mxu0 %v1207
    %1333 = vmatprep.subr.bf16.mxu0 0
    %1334 = vmatpush1.bf16.msra.mxu0 %v1206
    %1335 = vmatprep.subr.bf16.mxu0 0
    %1336 = vmatpush1.bf16.msra.mxu0 %v1205
    %1337 = vmatprep.subr.bf16.mxu0 0
    %1338 = vmatpush1.bf16.msra.mxu0 %v1204
    %1339 = vmatprep.subr.bf16.mxu0 0
    %1340 = vmatpush1.bf16.msra.mxu0 %v1203
    %1341 = vmatprep.subr.bf16.mxu0 0
    %1342 = vmatpush1.bf16.msra.mxu0 %v1202
    %1343 = vmatprep.subr.bf16.mxu0 0
    %1344 = vmatpush1.bf16.msra.mxu0 %v1201
    %1345 = vmatprep.subr.bf16.mxu0 0
    %1346 = vmatpush2.bf16.msra.mxu0 %v1216
    %1347 = vmatprep.subr.bf16.mxu0 0
    %1348 = vmatpush2.bf16.msra.mxu0 %v1215
    %1349 = vmatprep.subr.bf16.mxu0 0
    %1350 = vmatpush2.bf16.msra.mxu0 %v1214
    %1351 = vmatprep.subr.bf16.mxu0 0
    %1352 = vmatpush2.bf16.msra.mxu0 %v1213
    %1353 = vmatprep.subr.bf16.mxu0 0
    %1354 = vmatpush2.bf16.msra.mxu0 %v1212
    %1355 = vmatprep.subr.bf16.mxu0 0
    %1356 = vmatpush2.bf16.msra.mxu0 %v1211
    %1357 = vmatprep.subr.bf16.mxu0 0
    %1358 = vmatpush2.bf16.msra.mxu0 %v1210
    %1359 = vmatprep.subr.bf16.mxu0 0
    %1360 = vmatpush2.bf16.msra.mxu0 %v1209
    %1361 = vmatprep.mubr.bf16.mxu0 %v803
    %1362 = vmatmul.mubr.bf16.gmra.mxu0 %v802
    %v1363 = vpop.f32.mrf.mxu0
    %v1364 = vadd.f32 %v943, %v1363
    %v1365 = vpop.f32.mrf.mxu0
    %v1366 = vpop.f32.mrf.mxu0
    %v1367 = vpop.f32.mrf.mxu0
    %1368 = vdwg.mxu0
    %1369 = vmatprep.subr.bf16.mxu0 0
    %1370 = vmatpush1.bf16.msra.mxu0 %v1224
    %1371 = vmatprep.subr.bf16.mxu0 0
    %1372 = vmatpush1.bf16.msra.mxu0 %v1223
    %1373 = vmatprep.subr.bf16.mxu0 0
    %1374 = vmatpush1.bf16.msra.mxu0 %v1222
    %1375 = vmatprep.subr.bf16.mxu0 0
    %1376 = vmatpush1.bf16.msra.mxu0 %v1221
    %1377 = vmatprep.subr.bf16.mxu0 0
    %1378 = vmatpush1.bf16.msra.mxu0 %v1220
    %1379 = vmatprep.subr.bf16.mxu0 0
    %1380 = vmatpush1.bf16.msra.mxu0 %v1219
    %1381 = vmatprep.subr.bf16.mxu0 0
    %1382 = vmatpush1.bf16.msra.mxu0 %v1218
    %1383 = vmatprep.subr.bf16.mxu0 0
    %1384 = vmatpush1.bf16.msra.mxu0 %v1217
    %1385 = vmatprep.subr.bf16.mxu0 0
    %1386 = vmatpush2.bf16.msra.mxu0 %v1232
    %1387 = vmatprep.subr.bf16.mxu0 0
    %1388 = vmatpush2.bf16.msra.mxu0 %v1231
    %1389 = vmatprep.subr.bf16.mxu0 0
    %1390 = vmatpush2.bf16.msra.mxu0 %v1230
    %1391 = vmatprep.subr.bf16.mxu0 0
    %1392 = vmatpush2.bf16.msra.mxu0 %v1229
    %1393 = vmatprep.subr.bf16.mxu0 0
    %1394 = vmatpush2.bf16.msra.mxu0 %v1228
    %1395 = vmatprep.subr.bf16.mxu0 0
    %1396 = vmatpush2.bf16.msra.mxu0 %v1227
    %1397 = vmatprep.subr.bf16.mxu0 0
    %1398 = vmatpush2.bf16.msra.mxu0 %v1226
    %1399 = vmatprep.subr.bf16.mxu0 0
    %1400 = vmatpush2.bf16.msra.mxu0 %v1225
    %1401 = vmatprep.mubr.bf16.mxu0 %v805
    %1402 = vmatmul.mubr.bf16.gmra.mxu0 %v804
    %v1403 = vpop.f32.mrf.mxu0
    %v1404 = vadd.f32 %v1364, %v1403
    %v1405 = vpop.f32.mrf.mxu0
    %v1406 = vpop.f32.mrf.mxu0
    %v1407 = vpop.f32.mrf.mxu0
    %1408 = vdwg.mxu0
    %1409 = vmatprep.subr.bf16.mxu0 0
    %1410 = vmatpush1.bf16.msra.mxu0 %v1240
    %1411 = vmatprep.subr.bf16.mxu0 0
    %1412 = vmatpush1.bf16.msra.mxu0 %v1239
    %1413 = vmatprep.subr.bf16.mxu0 0
    %1414 = vmatpush1.bf16.msra.mxu0 %v1238
    %1415 = vmatprep.subr.bf16.mxu0 0
    %1416 = vmatpush1.bf16.msra.mxu0 %v1237
    %1417 = vmatprep.subr.bf16.mxu0 0
    %1418 = vmatpush1.bf16.msra.mxu0 %v1236
    %1419 = vmatprep.subr.bf16.mxu0 0
    %1420 = vmatpush1.bf16.msra.mxu0 %v1235
    %1421 = vmatprep.subr.bf16.mxu0 0
    %1422 = vmatpush1.bf16.msra.mxu0 %v1234
    %1423 = vmatprep.subr.bf16.mxu0 0
    %1424 = vmatpush1.bf16.msra.mxu0 %v1233
    %1425 = vmatprep.subr.bf16.mxu0 0
    %1426 = vmatpush2.bf16.msra.mxu0 %v1248
    %1427 = vmatprep.subr.bf16.mxu0 0
    %1428 = vmatpush2.bf16.msra.mxu0 %v1247
    %1429 = vmatprep.subr.bf16.mxu0 0
    %1430 = vmatpush2.bf16.msra.mxu0 %v1246
    %1431 = vmatprep.subr.bf16.mxu0 0
    %1432 = vmatpush2.bf16.msra.mxu0 %v1245
    %1433 = vmatprep.subr.bf16.mxu0 0
    %1434 = vmatpush2.bf16.msra.mxu0 %v1244
    %1435 = vmatprep.subr.bf16.mxu0 0
    %1436 = vmatpush2.bf16.msra.mxu0 %v1243
    %1437 = vmatprep.subr.bf16.mxu0 0
    %1438 = vmatpush2.bf16.msra.mxu0 %v1242
    %1439 = vmatprep.subr.bf16.mxu0 0
    %1440 = vmatpush2.bf16.msra.mxu0 %v1241
    %1441 = vmatprep.mubr.bf16.mxu0 %v807
    %1442 = vmatmul.mubr.bf16.gmra.mxu0 %v806
    %v1443 = vpop.f32.mrf.mxu0
    %v1444 = vadd.f32 %v1404, %v1443
    %v1445 = vpop.f32.mrf.mxu0
    %v1446 = vpop.f32.mrf.mxu0
    %v1447 = vpop.f32.mrf.mxu0
    %1448 = vdwg.mxu0
    %1449 = vmatprep.subr.bf16.mxu0 0
    %1450 = vmatpush1.bf16.msra.mxu0 %v1256
    %1451 = vmatprep.subr.bf16.mxu0 0
    %1452 = vmatpush1.bf16.msra.mxu0 %v1255
    %1453 = vmatprep.subr.bf16.mxu0 0
    %1454 = vmatpush1.bf16.msra.mxu0 %v1254
    %1455 = vmatprep.subr.bf16.mxu0 0
    %1456 = vmatpush1.bf16.msra.mxu0 %v1253
    %1457 = vmatprep.subr.bf16.mxu0 0
    %1458 = vmatpush1.bf16.msra.mxu0 %v1252
    %1459 = vmatprep.subr.bf16.mxu0 0
    %1460 = vmatpush1.bf16.msra.mxu0 %v1251
    %1461 = vmatprep.subr.bf16.mxu0 0
    %1462 = vmatpush1.bf16.msra.mxu0 %v1250
    %1463 = vmatprep.subr.bf16.mxu0 0
    %1464 = vmatpush1.bf16.msra.mxu0 %v1249
    %1465 = vmatprep.subr.bf16.mxu0 0
    %1466 = vmatpush2.bf16.msra.mxu0 %v1264
    %1467 = vmatprep.subr.bf16.mxu0 0
    %1468 = vmatpush2.bf16.msra.mxu0 %v1263
    %1469 = vmatprep.subr.bf16.mxu0 0
    %1470 = vmatpush2.bf16.msra.mxu0 %v1262
    %1471 = vmatprep.subr.bf16.mxu0 0
    %1472 = vmatpush2.bf16.msra.mxu0 %v1261
    %1473 = vmatprep.subr.bf16.mxu0 0
    %1474 = vmatpush2.bf16.msra.mxu0 %v1260
    %1475 = vmatprep.subr.bf16.mxu0 0
    %1476 = vmatpush2.bf16.msra.mxu0 %v1259
    %1477 = vmatprep.subr.bf16.mxu0 0
    %1478 = vmatpush2.bf16.msra.mxu0 %v1258
    %1479 = vmatprep.subr.bf16.mxu0 0
    %1480 = vmatpush2.bf16.msra.mxu0 %v1257
    %1481 = vmatprep.mubr.bf16.mxu0 %v809
    %1482 = vmatmul.mubr.bf16.gmra.mxu0 %v808
    %v1483 = vpop.f32.mrf.mxu0
    %v1484 = vadd.f32 %v1444, %v1483
    %v1485 = vpop.f32.mrf.mxu0
    %v1486 = vpop.f32.mrf.mxu0
    %v1487 = vpop.f32.mrf.mxu0
    %1488 = vdwg.mxu0
    %1489 = vst [vmem:[%s9] sm:$0xff] %v1484
    %v1490 = vpack.c.bf16 %v1484, %v1484
    %v1491 = vld [vmem:[#allocation9] sm:$0xff]
    %v1492 = vld [vmem:[#allocation9 + $0x8] sm:$0xff]
    %v1493 = vld [vmem:[#allocation9 + $0x10] sm:$0xff]
    %v1494 = vld [vmem:[#allocation9 + $0x18] sm:$0xff]
    %v1495 = vld [vmem:[#allocation9 + $0x20] sm:$0xff]
    %v1496 = vld [vmem:[#allocation9 + $0x28] sm:$0xff]
    %v1497 = vld [vmem:[#allocation9 + $0x30] sm:$0xff]
    %v1498 = vld [vmem:[#allocation9 + $0x38] sm:$0xff]
    %v1499 = vld [vmem:[#allocation9 + $0x40] sm:$0xff]
    %v1500 = vld [vmem:[#allocation9 + $0x48] sm:$0xff]
    %v1501 = vld [vmem:[#allocation9 + $0x50] sm:$0xff]
    %v1502 = vld [vmem:[#allocation9 + $0x58] sm:$0xff]
    %v1503 = vld [vmem:[#allocation9 + $0x60] sm:$0xff]
    %v1504 = vld [vmem:[#allocation9 + $0x68] sm:$0xff]
    %v1505 = vld [vmem:[#allocation9 + $0x70] sm:$0xff]
    %v1506 = vld [vmem:[#allocation9 + $0x78] sm:$0xff]
    %v1507 = vld [vmem:[#allocation9 + $0x80] sm:$0xff]
    %v1508 = vld [vmem:[#allocation9 + $0x88] sm:$0xff]
    %v1509 = vld [vmem:[#allocation9 + $0x90] sm:$0xff]
    %v1510 = vld [vmem:[#allocation9 + $0x98] sm:$0xff]
    %v1511 = vld [vmem:[#allocation9 + $0xa0] sm:$0xff]
    %v1512 = vld [vmem:[#allocation9 + $0xa8] sm:$0xff]
    %v1513 = vld [vmem:[#allocation9 + $0xb0] sm:$0xff]
    %v1514 = vld [vmem:[#allocation9 + $0xb8] sm:$0xff]
    %v1515 = vld [vmem:[#allocation9 + $0xc0] sm:$0xff]
    %v1516 = vld [vmem:[#allocation9 + $0xc8] sm:$0xff]
    %v1517 = vld [vmem:[#allocation9 + $0xd0] sm:$0xff]
    %v1518 = vld [vmem:[#allocation9 + $0xd8] sm:$0xff]
    %v1519 = vld [vmem:[#allocation9 + $0xe0] sm:$0xff]
    %v1520 = vld [vmem:[#allocation9 + $0xe8] sm:$0xff]
    %v1521 = vld [vmem:[#allocation9 + $0xf0] sm:$0xff]
    %v1522 = vld [vmem:[#allocation9 + $0xf8] sm:$0xff]
    %v1523 = vld [vmem:[#allocation9 + $0x100] sm:$0xff]
    %v1524 = vld [vmem:[#allocation9 + $0x108] sm:$0xff]
    %v1525 = vld [vmem:[#allocation9 + $0x110] sm:$0xff]
    %v1526 = vld [vmem:[#allocation9 + $0x118] sm:$0xff]
    %v1527 = vld [vmem:[#allocation9 + $0x120] sm:$0xff]
    %v1528 = vld [vmem:[#allocation9 + $0x128] sm:$0xff]
    %v1529 = vld [vmem:[#allocation9 + $0x130] sm:$0xff]
    %v1530 = vld [vmem:[#allocation9 + $0x138] sm:$0xff]
    %v1531 = vld [vmem:[#allocation9 + $0x140] sm:$0xff]
    %v1532 = vld [vmem:[#allocation9 + $0x148] sm:$0xff]
    %v1533 = vld [vmem:[#allocation9 + $0x150] sm:$0xff]
    %v1534 = vld [vmem:[#allocation9 + $0x158] sm:$0xff]
    %v1535 = vld [vmem:[#allocation9 + $0x160] sm:$0xff]
    %v1536 = vld [vmem:[#allocation9 + $0x168] sm:$0xff]
    %v1537 = vld [vmem:[#allocation9 + $0x170] sm:$0xff]
    %v1538 = vld [vmem:[#allocation9 + $0x178] sm:$0xff]
    %v1539 = vld [vmem:[#allocation9 + $0x180] sm:$0xff]
    %v1540 = vld [vmem:[#allocation9 + $0x188] sm:$0xff]
    %v1541 = vld [vmem:[#allocation9 + $0x190] sm:$0xff]
    %v1542 = vld [vmem:[#allocation9 + $0x198] sm:$0xff]
    %v1543 = vld [vmem:[#allocation9 + $0x1a0] sm:$0xff]
    %v1544 = vld [vmem:[#allocation9 + $0x1a8] sm:$0xff]
    %v1545 = vld [vmem:[#allocation9 + $0x1b0] sm:$0xff]
    %v1546 = vld [vmem:[#allocation9 + $0x1b8] sm:$0xff]
    %v1547 = vld [vmem:[#allocation9 + $0x1c0] sm:$0xff]
    %v1548 = vld [vmem:[#allocation9 + $0x1c8] sm:$0xff]
    %v1549 = vld [vmem:[#allocation9 + $0x1d0] sm:$0xff]
    %v1550 = vld [vmem:[#allocation9 + $0x1d8] sm:$0xff]
    %v1551 = vld [vmem:[#allocation9 + $0x1e0] sm:$0xff]
    %v1552 = vld [vmem:[#allocation9 + $0x1e8] sm:$0xff]
    %v1553 = vld [vmem:[#allocation9 + $0x1f0] sm:$0xff]
    %v1554 = vld [vmem:[#allocation9 + $0x1f8] sm:$0xff]
    %v1555 = vld [vmem:[%s7] sm:$0xff]
    %v1557 = vlaneseq
    %v1558 = vshrl.u32 %v1557, 7
    %v1559 = vsub.s32 0, %v1558
    %v1560 = vrot.slane %v1555, %v1559
    %v1561 = vlaneseq
    %v1562 = vshrl.u32 %v1561, 7
    %v1563 = vsub.s32 1, %v1562
    %v1564 = vrot.slane %v1555, %v1563
    %v1565 = vlaneseq
    %v1566 = vshrl.u32 %v1565, 7
    %v1567 = vsub.s32 2, %v1566
    %v1568 = vrot.slane %v1555, %v1567
    %v1569 = vlaneseq
    %v1570 = vshrl.u32 %v1569, 7
    %v1571 = vsub.s32 3, %v1570
    %v1572 = vrot.slane %v1555, %v1571
    %v1573 = vlaneseq
    %v1574 = vshrl.u32 %v1573, 7
    %v1575 = vsub.s32 4, %v1574
    %v1576 = vrot.slane %v1555, %v1575
    %v1577 = vlaneseq
    %v1578 = vshrl.u32 %v1577, 7
    %v1579 = vsub.s32 5, %v1578
    %v1580 = vrot.slane %v1555, %v1579
    %v1581 = vlaneseq
    %v1582 = vshrl.u32 %v1581, 7
    %v1583 = vsub.s32 6, %v1582
    %v1584 = vrot.slane %v1555, %v1583
    %v1585 = vlaneseq
    %v1586 = vshrl.u32 %v1585, 7
    %v1587 = vsub.s32 7, %v1586
    %v1588 = vrot.slane %v1555, %v1587
    %v1661 = vunpack.c.l.b16 %v1491
    %v1662 = vunpack.c.h.b16 %v1491
    %v1663 = vunpack.c.l.b16 %v1492
    %v1664 = vunpack.c.h.b16 %v1492
    %v1665 = vunpack.c.l.b16 %v1493
    %v1666 = vunpack.c.h.b16 %v1493
    %v1667 = vunpack.c.l.b16 %v1494
    %v1668 = vunpack.c.h.b16 %v1494
    %v1669 = vunpack.c.l.b16 %v1495
    %v1670 = vunpack.c.h.b16 %v1495
    %v1671 = vunpack.c.l.b16 %v1496
    %v1672 = vunpack.c.h.b16 %v1496
    %v1673 = vunpack.c.l.b16 %v1497
    %v1674 = vunpack.c.h.b16 %v1497
    %v1675 = vunpack.c.l.b16 %v1498
    %v1676 = vunpack.c.h.b16 %v1498
    %v1677 = vunpack.c.l.b16 %v1499
    %v1678 = vunpack.c.h.b16 %v1499
    %v1679 = vunpack.c.l.b16 %v1500
    %v1680 = vunpack.c.h.b16 %v1500
    %v1681 = vunpack.c.l.b16 %v1501
    %v1682 = vunpack.c.h.b16 %v1501
    %v1683 = vunpack.c.l.b16 %v1502
    %v1684 = vunpack.c.h.b16 %v1502
    %v1685 = vunpack.c.l.b16 %v1503
    %v1686 = vunpack.c.h.b16 %v1503
    %v1687 = vunpack.c.l.b16 %v1504
    %v1688 = vunpack.c.h.b16 %v1504
    %v1689 = vunpack.c.l.b16 %v1505
    %v1690 = vunpack.c.h.b16 %v1505
    %v1691 = vunpack.c.l.b16 %v1506
    %v1692 = vunpack.c.h.b16 %v1506
    %v1693 = vunpack.c.l.b16 %v1507
    %v1694 = vunpack.c.h.b16 %v1507
    %v1695 = vunpack.c.l.b16 %v1508
    %v1696 = vunpack.c.h.b16 %v1508
    %v1697 = vunpack.c.l.b16 %v1509
    %v1698 = vunpack.c.h.b16 %v1509
    %v1699 = vunpack.c.l.b16 %v1510
    %v1700 = vunpack.c.h.b16 %v1510
    %v1701 = vunpack.c.l.b16 %v1511
    %v1702 = vunpack.c.h.b16 %v1511
    %v1703 = vunpack.c.l.b16 %v1512
    %v1704 = vunpack.c.h.b16 %v1512
    %v1705 = vunpack.c.l.b16 %v1513
    %v1706 = vunpack.c.h.b16 %v1513
    %v1707 = vunpack.c.l.b16 %v1514
    %v1708 = vunpack.c.h.b16 %v1514
    %v1709 = vunpack.c.l.b16 %v1515
    %v1710 = vunpack.c.h.b16 %v1515
    %v1711 = vunpack.c.l.b16 %v1516
    %v1712 = vunpack.c.h.b16 %v1516
    %v1713 = vunpack.c.l.b16 %v1517
    %v1714 = vunpack.c.h.b16 %v1517
    %v1715 = vunpack.c.l.b16 %v1518
    %v1716 = vunpack.c.h.b16 %v1518
    %v1717 = vunpack.c.l.b16 %v1519
    %v1718 = vunpack.c.h.b16 %v1519
    %v1719 = vunpack.c.l.b16 %v1520
    %v1720 = vunpack.c.h.b16 %v1520
    %v1721 = vunpack.c.l.b16 %v1521
    %v1722 = vunpack.c.h.b16 %v1521
    %v1723 = vunpack.c.l.b16 %v1522
    %v1724 = vunpack.c.h.b16 %v1522
    %v1725 = vunpack.c.l.b16 %v1523
    %v1726 = vunpack.c.h.b16 %v1523
    %v1727 = vunpack.c.l.b16 %v1524
    %v1728 = vunpack.c.h.b16 %v1524
    %v1729 = vunpack.c.l.b16 %v1525
    %v1730 = vunpack.c.h.b16 %v1525
    %v1731 = vunpack.c.l.b16 %v1526
    %v1732 = vunpack.c.h.b16 %v1526
    %v1733 = vunpack.c.l.b16 %v1527
    %v1734 = vunpack.c.h.b16 %v1527
    %v1735 = vunpack.c.l.b16 %v1528
    %v1736 = vunpack.c.h.b16 %v1528
    %v1737 = vunpack.c.l.b16 %v1529
    %v1738 = vunpack.c.h.b16 %v1529
    %v1739 = vunpack.c.l.b16 %v1530
    %v1740 = vunpack.c.h.b16 %v1530
    %v1741 = vunpack.c.l.b16 %v1531
    %v1742 = vunpack.c.h.b16 %v1531
    %v1743 = vunpack.c.l.b16 %v1532
    %v1744 = vunpack.c.h.b16 %v1532
    %v1745 = vunpack.c.l.b16 %v1533
    %v1746 = vunpack.c.h.b16 %v1533
    %v1747 = vunpack.c.l.b16 %v1534
    %v1748 = vunpack.c.h.b16 %v1534
    %v1749 = vunpack.c.l.b16 %v1535
    %v1750 = vunpack.c.h.b16 %v1535
    %v1751 = vunpack.c.l.b16 %v1536
    %v1752 = vunpack.c.h.b16 %v1536
    %v1753 = vunpack.c.l.b16 %v1537
    %v1754 = vunpack.c.h.b16 %v1537
    %v1755 = vunpack.c.l.b16 %v1538
    %v1756 = vunpack.c.h.b16 %v1538
    %v1757 = vunpack.c.l.b16 %v1539
    %v1758 = vunpack.c.h.b16 %v1539
    %v1759 = vunpack.c.l.b16 %v1540
    %v1760 = vunpack.c.h.b16 %v1540
    %v1761 = vunpack.c.l.b16 %v1541
    %v1762 = vunpack.c.h.b16 %v1541
    %v1763 = vunpack.c.l.b16 %v1542
    %v1764 = vunpack.c.h.b16 %v1542
    %v1765 = vunpack.c.l.b16 %v1543
    %v1766 = vunpack.c.h.b16 %v1543
    %v1767 = vunpack.c.l.b16 %v1544
    %v1768 = vunpack.c.h.b16 %v1544
    %v1769 = vunpack.c.l.b16 %v1545
    %v1770 = vunpack.c.h.b16 %v1545
    %v1771 = vunpack.c.l.b16 %v1546
    %v1772 = vunpack.c.h.b16 %v1546
    %v1773 = vunpack.c.l.b16 %v1547
    %v1774 = vunpack.c.h.b16 %v1547
    %v1775 = vunpack.c.l.b16 %v1548
    %v1776 = vunpack.c.h.b16 %v1548
    %v1777 = vunpack.c.l.b16 %v1549
    %v1778 = vunpack.c.h.b16 %v1549
    %v1779 = vunpack.c.l.b16 %v1550
    %v1780 = vunpack.c.h.b16 %v1550
    %v1781 = vunpack.c.l.b16 %v1551
    %v1782 = vunpack.c.h.b16 %v1551
    %v1783 = vunpack.c.l.b16 %v1552
    %v1784 = vunpack.c.h.b16 %v1552
    %v1785 = vunpack.c.l.b16 %v1553
    %v1786 = vunpack.c.h.b16 %v1553
    %v1787 = vunpack.c.l.b16 %v1554
    %v1788 = vunpack.c.h.b16 %v1554
    %v1789 = vpack.c.b16 %v1669, %v1661
    %v1790 = vpack.c.b16 %v1670, %v1662
    %v1791 = vpack.c.b16 %v1671, %v1663
    %v1792 = vpack.c.b16 %v1672, %v1664
    %v1793 = vpack.c.b16 %v1673, %v1665
    %v1794 = vpack.c.b16 %v1674, %v1666
    %v1795 = vpack.c.b16 %v1675, %v1667
    %v1796 = vpack.c.b16 %v1676, %v1668
    %v1797 = vpack.c.b16 %v1685, %v1677
    %v1798 = vpack.c.b16 %v1686, %v1678
    %v1799 = vpack.c.b16 %v1687, %v1679
    %v1800 = vpack.c.b16 %v1688, %v1680
    %v1801 = vpack.c.b16 %v1689, %v1681
    %v1802 = vpack.c.b16 %v1690, %v1682
    %v1803 = vpack.c.b16 %v1691, %v1683
    %v1804 = vpack.c.b16 %v1692, %v1684
    %v1805 = vpack.c.b16 %v1701, %v1693
    %v1806 = vpack.c.b16 %v1702, %v1694
    %v1807 = vpack.c.b16 %v1703, %v1695
    %v1808 = vpack.c.b16 %v1704, %v1696
    %v1809 = vpack.c.b16 %v1705, %v1697
    %v1810 = vpack.c.b16 %v1706, %v1698
    %v1811 = vpack.c.b16 %v1707, %v1699
    %v1812 = vpack.c.b16 %v1708, %v1700
    %v1813 = vpack.c.b16 %v1717, %v1709
    %v1814 = vpack.c.b16 %v1718, %v1710
    %v1815 = vpack.c.b16 %v1719, %v1711
    %v1816 = vpack.c.b16 %v1720, %v1712
    %v1817 = vpack.c.b16 %v1721, %v1713
    %v1818 = vpack.c.b16 %v1722, %v1714
    %v1819 = vpack.c.b16 %v1723, %v1715
    %v1820 = vpack.c.b16 %v1724, %v1716
    %v1821 = vpack.c.b16 %v1733, %v1725
    %v1822 = vpack.c.b16 %v1734, %v1726
    %v1823 = vpack.c.b16 %v1735, %v1727
    %v1824 = vpack.c.b16 %v1736, %v1728
    %v1825 = vpack.c.b16 %v1737, %v1729
    %v1826 = vpack.c.b16 %v1738, %v1730
    %v1827 = vpack.c.b16 %v1739, %v1731
    %v1828 = vpack.c.b16 %v1740, %v1732
    %v1829 = vpack.c.b16 %v1749, %v1741
    %v1830 = vpack.c.b16 %v1750, %v1742
    %v1831 = vpack.c.b16 %v1751, %v1743
    %v1832 = vpack.c.b16 %v1752, %v1744
    %v1833 = vpack.c.b16 %v1753, %v1745
    %v1834 = vpack.c.b16 %v1754, %v1746
    %v1835 = vpack.c.b16 %v1755, %v1747
    %v1836 = vpack.c.b16 %v1756, %v1748
    %v1837 = vpack.c.b16 %v1765, %v1757
    %v1838 = vpack.c.b16 %v1766, %v1758
    %v1839 = vpack.c.b16 %v1767, %v1759
    %v1840 = vpack.c.b16 %v1768, %v1760
    %v1841 = vpack.c.b16 %v1769, %v1761
    %v1842 = vpack.c.b16 %v1770, %v1762
    %v1843 = vpack.c.b16 %v1771, %v1763
    %v1844 = vpack.c.b16 %v1772, %v1764
    %v1845 = vpack.c.b16 %v1781, %v1773
    %v1846 = vpack.c.b16 %v1782, %v1774
    %v1847 = vpack.c.b16 %v1783, %v1775
    %v1848 = vpack.c.b16 %v1784, %v1776
    %v1849 = vpack.c.b16 %v1785, %v1777
    %v1850 = vpack.c.b16 %v1786, %v1778
    %v1851 = vpack.c.b16 %v1787, %v1779
    %v1852 = vpack.c.b16 %v1788, %v1780
    %1917 = vmatprep.subr.bf16.mxu0 %v1846
    %1918 = vmatpush1.bf16.msra.mxu0 %v1845
    %1919 = vmatprep.subr.bf16.mxu0 %v1838
    %1920 = vmatpush1.bf16.msra.mxu0 %v1837
    %1921 = vmatprep.subr.bf16.mxu0 %v1830
    %1922 = vmatpush1.bf16.msra.mxu0 %v1829
    %1923 = vmatprep.subr.bf16.mxu0 %v1822
    %1924 = vmatpush1.bf16.msra.mxu0 %v1821
    %1925 = vmatprep.subr.bf16.mxu0 %v1814
    %1926 = vmatpush1.bf16.msra.mxu0 %v1813
    %1927 = vmatprep.subr.bf16.mxu0 %v1806
    %1928 = vmatpush1.bf16.msra.mxu0 %v1805
    %1929 = vmatprep.subr.bf16.mxu0 %v1798
    %1930 = vmatpush1.bf16.msra.mxu0 %v1797
    %1931 = vmatprep.subr.bf16.mxu0 %v1790
    %1932 = vmatpush1.bf16.msra.mxu0 %v1789
    %1933 = vmatprep.subr.bf16.mxu0 0
    %1934 = vmatpush2.bf16.msra.mxu0 0
    %1935 = vmatprep.subr.bf16.mxu0 0
    %1936 = vmatpush2.bf16.msra.mxu0 0
    %1937 = vmatprep.subr.bf16.mxu0 0
    %1938 = vmatpush2.bf16.msra.mxu0 0
    %1939 = vmatprep.subr.bf16.mxu0 0
    %1940 = vmatpush2.bf16.msra.mxu0 0
    %1941 = vmatprep.subr.bf16.mxu0 0
    %1942 = vmatpush2.bf16.msra.mxu0 0
    %1943 = vmatprep.subr.bf16.mxu0 0
    %1944 = vmatpush2.bf16.msra.mxu0 0
    %1945 = vmatprep.subr.bf16.mxu0 0
    %1946 = vmatpush2.bf16.msra.mxu0 0
    %1947 = vmatprep.subr.bf16.mxu0 0
    %1948 = vmatpush2.bf16.msra.mxu0 0
    %1949 = vmatprep.mubr.bf16.mxu0 0
    %1950 = vmatmul.mubr.bf16.gmra.mxu0 %v1490
    %v1951 = vpop.f32.mrf.mxu0
    %v1952 = vadd.f32 %v1560, %v1951
    %v1953 = vpop.f32.mrf.mxu0
    %v1954 = vadd.f32 %v1564, %v1953
    %v1955 = vpop.f32.mrf.mxu0
    %v1956 = vpop.f32.mrf.mxu0
    %1957 = vdwg.mxu0
    %1958 = vmatprep.subr.bf16.mxu0 %v1848
    %1959 = vmatpush1.bf16.msra.mxu0 %v1847
    %1960 = vmatprep.subr.bf16.mxu0 %v1840
    %1961 = vmatpush1.bf16.msra.mxu0 %v1839
    %1962 = vmatprep.subr.bf16.mxu0 %v1832
    %1963 = vmatpush1.bf16.msra.mxu0 %v1831
    %1964 = vmatprep.subr.bf16.mxu0 %v1824
    %1965 = vmatpush1.bf16.msra.mxu0 %v1823
    %1966 = vmatprep.subr.bf16.mxu0 %v1816
    %1967 = vmatpush1.bf16.msra.mxu0 %v1815
    %1968 = vmatprep.subr.bf16.mxu0 %v1808
    %1969 = vmatpush1.bf16.msra.mxu0 %v1807
    %1970 = vmatprep.subr.bf16.mxu0 %v1800
    %1971 = vmatpush1.bf16.msra.mxu0 %v1799
    %1972 = vmatprep.subr.bf16.mxu0 %v1792
    %1973 = vmatpush1.bf16.msra.mxu0 %v1791
    %1974 = vmatprep.subr.bf16.mxu0 0
    %1975 = vmatpush2.bf16.msra.mxu0 0
    %1976 = vmatprep.subr.bf16.mxu0 0
    %1977 = vmatpush2.bf16.msra.mxu0 0
    %1978 = vmatprep.subr.bf16.mxu0 0
    %1979 = vmatpush2.bf16.msra.mxu0 0
    %1980 = vmatprep.subr.bf16.mxu0 0
    %1981 = vmatpush2.bf16.msra.mxu0 0
    %1982 = vmatprep.subr.bf16.mxu0 0
    %1983 = vmatpush2.bf16.msra.mxu0 0
    %1984 = vmatprep.subr.bf16.mxu0 0
    %1985 = vmatpush2.bf16.msra.mxu0 0
    %1986 = vmatprep.subr.bf16.mxu0 0
    %1987 = vmatpush2.bf16.msra.mxu0 0
    %1988 = vmatprep.subr.bf16.mxu0 0
    %1989 = vmatpush2.bf16.msra.mxu0 0
    %1990 = vmatprep.mubr.bf16.mxu0 0
    %1991 = vmatmul.mubr.bf16.gmra.mxu0 %v1490
    %v1992 = vpop.f32.mrf.mxu0
    %v1993 = vadd.f32 %v1568, %v1992
    %v1994 = vpop.f32.mrf.mxu0
    %v1995 = vadd.f32 %v1572, %v1994
    %v1996 = vpop.f32.mrf.mxu0
    %v1997 = vpop.f32.mrf.mxu0
    %1998 = vdwg.mxu0
    %1999 = vmatprep.subr.bf16.mxu0 %v1850
    %2000 = vmatpush1.bf16.msra.mxu0 %v1849
    %2001 = vmatprep.subr.bf16.mxu0 %v1842
    %2002 = vmatpush1.bf16.msra.mxu0 %v1841
    %2003 = vmatprep.subr.bf16.mxu0 %v1834
    %2004 = vmatpush1.bf16.msra.mxu0 %v1833
    %2005 = vmatprep.subr.bf16.mxu0 %v1826
    %2006 = vmatpush1.bf16.msra.mxu0 %v1825
    %2007 = vmatprep.subr.bf16.mxu0 %v1818
    %2008 = vmatpush1.bf16.msra.mxu0 %v1817
    %2009 = vmatprep.subr.bf16.mxu0 %v1810
    %2010 = vmatpush1.bf16.msra.mxu0 %v1809
    %2011 = vmatprep.subr.bf16.mxu0 %v1802
    %2012 = vmatpush1.bf16.msra.mxu0 %v1801
    %2013 = vmatprep.subr.bf16.mxu0 %v1794
    %2014 = vmatpush1.bf16.msra.mxu0 %v1793
    %2015 = vmatprep.subr.bf16.mxu0 0
    %2016 = vmatpush2.bf16.msra.mxu0 0
    %2017 = vmatprep.subr.bf16.mxu0 0
    %2018 = vmatpush2.bf16.msra.mxu0 0
    %2019 = vmatprep.subr.bf16.mxu0 0
    %2020 = vmatpush2.bf16.msra.mxu0 0
    %2021 = vmatprep.subr.bf16.mxu0 0
    %2022 = vmatpush2.bf16.msra.mxu0 0
    %2023 = vmatprep.subr.bf16.mxu0 0
    %2024 = vmatpush2.bf16.msra.mxu0 0
    %2025 = vmatprep.subr.bf16.mxu0 0
    %2026 = vmatpush2.bf16.msra.mxu0 0
    %2027 = vmatprep.subr.bf16.mxu0 0
    %2028 = vmatpush2.bf16.msra.mxu0 0
    %2029 = vmatprep.subr.bf16.mxu0 0
    %2030 = vmatpush2.bf16.msra.mxu0 0
    %2031 = vmatprep.mubr.bf16.mxu0 0
    %2032 = vmatmul.mubr.bf16.gmra.mxu0 %v1490
    %v2033 = vpop.f32.mrf.mxu0
    %v2034 = vadd.f32 %v1576, %v2033
    %v2035 = vpop.f32.mrf.mxu0
    %v2036 = vadd.f32 %v1580, %v2035
    %v2037 = vpop.f32.mrf.mxu0
    %v2038 = vpop.f32.mrf.mxu0
    %2039 = vdwg.mxu0
    %2040 = vmatprep.subr.bf16.mxu0 %v1852
    %2041 = vmatpush1.bf16.msra.mxu0 %v1851
    %2042 = vmatprep.subr.bf16.mxu0 %v1844
    %2043 = vmatpush1.bf16.msra.mxu0 %v1843
    %2044 = vmatprep.subr.bf16.mxu0 %v1836
    %2045 = vmatpush1.bf16.msra.mxu0 %v1835
    %2046 = vmatprep.subr.bf16.mxu0 %v1828
    %2047 = vmatpush1.bf16.msra.mxu0 %v1827
    %2048 = vmatprep.subr.bf16.mxu0 %v1820
    %2049 = vmatpush1.bf16.msra.mxu0 %v1819
    %2050 = vmatprep.subr.bf16.mxu0 %v1812
    %2051 = vmatpush1.bf16.msra.mxu0 %v1811
    %2052 = vmatprep.subr.bf16.mxu0 %v1804
    %2053 = vmatpush1.bf16.msra.mxu0 %v1803
    %2054 = vmatprep.subr.bf16.mxu0 %v1796
    %2055 = vmatpush1.bf16.msra.mxu0 %v1795
    %2056 = vmatprep.subr.bf16.mxu0 0
    %2057 = vmatpush2.bf16.msra.mxu0 0
    %2058 = vmatprep.subr.bf16.mxu0 0
    %2059 = vmatpush2.bf16.msra.mxu0 0
    %2060 = vmatprep.subr.bf16.mxu0 0
    %2061 = vmatpush2.bf16.msra.mxu0 0
    %2062 = vmatprep.subr.bf16.mxu0 0
    %2063 = vmatpush2.bf16.msra.mxu0 0
    %2064 = vmatprep.subr.bf16.mxu0 0
    %2065 = vmatpush2.bf16.msra.mxu0 0
    %2066 = vmatprep.subr.bf16.mxu0 0
    %2067 = vmatpush2.bf16.msra.mxu0 0
    %2068 = vmatprep.subr.bf16.mxu0 0
    %2069 = vmatpush2.bf16.msra.mxu0 0
    %2070 = vmatprep.subr.bf16.mxu0 0
    %2071 = vmatpush2.bf16.msra.mxu0 0
    %2072 = vmatprep.mubr.bf16.mxu0 0
    %2073 = vmatmul.mubr.bf16.gmra.mxu0 %v1490
    %v2074 = vpop.f32.mrf.mxu0
    %v2075 = vadd.f32 %v1584, %v2074
    %v2076 = vpop.f32.mrf.mxu0
    %v2077 = vadd.f32 %v1588, %v2076
    %v2078 = vpop.f32.mrf.mxu0
    %v2079 = vpop.f32.mrf.mxu0
    %2080 = vdwg.mxu0
    %vm2081 = vcmp.gt.f32.partialorder %v1952, 0.0
    %vm2082 = vcmp.gt.f32.partialorder %v1954, 0.0
    %vm2083 = vcmp.gt.f32.partialorder %v1993, 0.0
    %vm2084 = vcmp.gt.f32.partialorder %v1995, 0.0
    %vm2085 = vcmp.gt.f32.partialorder %v2034, 0.0
    %vm2086 = vcmp.gt.f32.partialorder %v2036, 0.0
    %vm2087 = vcmp.gt.f32.partialorder %v2075, 0.0
    %vm2088 = vcmp.gt.f32.partialorder %v2077, 0.0
    %v2089 = vmul.f32 %v1952, 0.01
    %v2090 = vmul.f32 %v1954, 0.01
    %v2091 = vmul.f32 %v1993, 0.01
    %v2092 = vmul.f32 %v1995, 0.01
    %v2093 = vmul.f32 %v2034, 0.01
    %v2094 = vmul.f32 %v2036, 0.01
    %v2095 = vmul.f32 %v2075, 0.01
    %v2096 = vmul.f32 %v2077, 0.01
    %v2097 = vsel %vm2081, %v1952, %v2089
    %v2098 = vsel %vm2082, %v1954, %v2090
    %v2099 = vsel %vm2083, %v1993, %v2091
    %v2100 = vsel %vm2084, %v1995, %v2092
    %v2101 = vsel %vm2085, %v2034, %v2093
    %v2102 = vsel %vm2086, %v2036, %v2094
    %v2103 = vsel %vm2087, %v2075, %v2095
    %v2104 = vsel %vm2088, %v2077, %v2096
    %s2105 = sld [smem:[#allocation2 + $0x2]]
    %s2106 = sld [smem:[#allocation2 + $0x3]]
    %v2107 = vadd.f32 %v2097, %v2098
    %v2108 = vadd.f32 %v2107, %v2099
    %v2109 = vadd.f32 %v2108, %v2100
    %v2110 = vadd.f32 %v2109, %v2101
    %v2111 = vadd.f32 %v2110, %v2102
    %v2112 = vadd.f32 %v2111, %v2103
    %v2113 = vadd.f32 %v2112, %v2104
    %2114 = vadd.xlane.f32.xlu0 %v2113
    %v2115 = vpop.xlane.xlu0 %2114
    %v2116 = vrot.slane %v2115, 4
    %v2117 = vadd.f32 %v2115, %v2116
    %v2118 = vrot.slane %v2117, 2
    %v2119 = vadd.f32 %v2117, %v2118
    %v2120 = vrot.slane %v2119, 1
    %v2121 = vadd.f32 %v2119, %v2120
    %s2122 = vtos %v2121
    %v2123 = vmul.f32 %v2097, %v2097
    %v2124 = vmul.f32 %v2098, %v2098
    %v2125 = vmul.f32 %v2099, %v2099
    %v2126 = vmul.f32 %v2100, %v2100
    %v2127 = vmul.f32 %v2101, %v2101
    %v2128 = vmul.f32 %v2102, %v2102
    %v2129 = vmul.f32 %v2103, %v2103
    %v2130 = vmul.f32 %v2104, %v2104
    %v2131 = vadd.f32 %v2123, %v2124
    %v2132 = vadd.f32 %v2131, %v2125
    %v2133 = vadd.f32 %v2132, %v2126
    %v2134 = vadd.f32 %v2133, %v2127
    %v2135 = vadd.f32 %v2134, %v2128
    %v2136 = vadd.f32 %v2135, %v2129
    %v2137 = vadd.f32 %v2136, %v2130
    %2138 = vadd.xlane.f32.xlu0 %v2137
    %v2139 = vpop.xlane.xlu0 %2138
    %v2140 = vrot.slane %v2139, 4
    %v2141 = vadd.f32 %v2139, %v2140
    %v2142 = vrot.slane %v2141, 2
    %v2143 = vadd.f32 %v2141, %v2142
    %v2144 = vrot.slane %v2143, 1
    %v2145 = vadd.f32 %v2143, %v2144
    %s2146 = vtos %v2145
    %v2147 = vrcp.pop 8192.0
    %s2148 = vtos %v2147
    %s2149 = smul.f32 %s2122, %s2148
    %v2150 = vrcp.pop 8192.0
    %s2151 = vtos %v2150
    %s2152 = smul.f32 %s2146, %s2151
    %s2153 = smul.f32 %s2149, %s2149
    %s2154 = ssub.f32 %s2152, %s2153
    %s2155 = smax.f32 %s2154, 0.0
    %s2156 = sadd.f32 %s2155, 1e-05
    %v2157 = vstv %s2156
    %v2158 = vrsqrt.pop %v2157
    %s2159 = vtos %v2158
    %s2160 = smul.f32 %s2159, %s2105
    %v2161 = vstv %s2149
    %v2162 = vsub.f32 %v2097, %v2161
    %v2163 = vsub.f32 %v2098, %v2161
    %v2164 = vsub.f32 %v2099, %v2161
    %v2165 = vsub.f32 %v2100, %v2161
    %v2166 = vsub.f32 %v2101, %v2161
    %v2167 = vsub.f32 %v2102, %v2161
    %v2168 = vsub.f32 %v2103, %v2161
    %v2169 = vsub.f32 %v2104, %v2161
    %v2170 = vstv %s2160
    %v2171 = vmul.f32 %v2162, %v2170
    %v2172 = vmul.f32 %v2163, %v2170
    %v2173 = vmul.f32 %v2164, %v2170
    %v2174 = vmul.f32 %v2165, %v2170
    %v2175 = vmul.f32 %v2166, %v2170
    %v2176 = vmul.f32 %v2167, %v2170
    %v2177 = vmul.f32 %v2168, %v2170
    %v2178 = vmul.f32 %v2169, %v2170
    %v2179 = vstv %s2106
    %v2180 = vadd.f32 %v2171, %v2179
    %v2181 = vadd.f32 %v2172, %v2179
    %v2182 = vadd.f32 %v2173, %v2179
    %v2183 = vadd.f32 %v2174, %v2179
    %v2184 = vadd.f32 %v2175, %v2179
    %v2185 = vadd.f32 %v2176, %v2179
    %v2186 = vadd.f32 %v2177, %v2179
    %v2187 = vadd.f32 %v2178, %v2179
    %v2188 = vpack.c.bf16 %v2180, %v2180
    %v2189 = vpack.c.bf16 %v2181, %v2181
    %v2190 = vpack.c.bf16 %v2182, %v2182
    %v2191 = vpack.c.bf16 %v2183, %v2183
    %v2192 = vpack.c.bf16 %v2184, %v2184
    %v2193 = vpack.c.bf16 %v2185, %v2185
    %v2194 = vpack.c.bf16 %v2186, %v2186
    %v2195 = vpack.c.bf16 %v2187, %v2187
    %v2196 = vld [vmem:[#allocation10] sm:$0xf]
    %v2197 = vld [vmem:[#allocation10 + $0x4] sm:$0xf]
    %v2198 = vld [vmem:[#allocation10 + $0x8] sm:$0xf]
    %v2199 = vld [vmem:[#allocation10 + $0xc] sm:$0xf]
    %v2200 = vld [vmem:[#allocation10 + $0x10] sm:$0xf]
    %v2201 = vld [vmem:[#allocation10 + $0x14] sm:$0xf]
    %v2202 = vld [vmem:[#allocation10 + $0x18] sm:$0xf]
    %v2203 = vld [vmem:[#allocation10 + $0x1c] sm:$0xf]
    %v2204 = vld [vmem:[#allocation10 + $0x20] sm:$0xf]
    %v2205 = vld [vmem:[#allocation10 + $0x24] sm:$0xf]
    %v2206 = vld [vmem:[#allocation10 + $0x28] sm:$0xf]
    %v2207 = vld [vmem:[#allocation10 + $0x2c] sm:$0xf]
    %v2208 = vld [vmem:[#allocation10 + $0x30] sm:$0xf]
    %v2209 = vld [vmem:[#allocation10 + $0x34] sm:$0xf]
    %v2210 = vld [vmem:[#allocation10 + $0x38] sm:$0xf]
    %v2211 = vld [vmem:[#allocation10 + $0x3c] sm:$0xf]
    %v2212 = vld [vmem:[#allocation10 + $0x40] sm:$0xf]
    %v2213 = vld [vmem:[#allocation10 + $0x44] sm:$0xf]
    %v2214 = vld [vmem:[#allocation10 + $0x48] sm:$0xf]
    %v2215 = vld [vmem:[#allocation10 + $0x4c] sm:$0xf]
    %v2216 = vld [vmem:[#allocation10 + $0x50] sm:$0xf]
    %v2217 = vld [vmem:[#allocation10 + $0x54] sm:$0xf]
    %v2218 = vld [vmem:[#allocation10 + $0x58] sm:$0xf]
    %v2219 = vld [vmem:[#allocation10 + $0x5c] sm:$0xf]
    %v2220 = vld [vmem:[#allocation10 + $0x60] sm:$0xf]
    %v2221 = vld [vmem:[#allocation10 + $0x64] sm:$0xf]
    %v2222 = vld [vmem:[#allocation10 + $0x68] sm:$0xf]
    %v2223 = vld [vmem:[#allocation10 + $0x6c] sm:$0xf]
    %v2224 = vld [vmem:[#allocation10 + $0x70] sm:$0xf]
    %v2225 = vld [vmem:[#allocation10 + $0x74] sm:$0xf]
    %v2226 = vld [vmem:[#allocation10 + $0x78] sm:$0xf]
    %v2227 = vld [vmem:[#allocation10 + $0x7c] sm:$0xf]
    %v2228 = vld [vmem:[#allocation10 + $0x80] sm:$0xf]
    %v2229 = vld [vmem:[#allocation10 + $0x84] sm:$0xf]
    %v2230 = vld [vmem:[#allocation10 + $0x88] sm:$0xf]
    %v2231 = vld [vmem:[#allocation10 + $0x8c] sm:$0xf]
    %v2232 = vld [vmem:[#allocation10 + $0x90] sm:$0xf]
    %v2233 = vld [vmem:[#allocation10 + $0x94] sm:$0xf]
    %v2234 = vld [vmem:[#allocation10 + $0x98] sm:$0xf]
    %v2235 = vld [vmem:[#allocation10 + $0x9c] sm:$0xf]
    %v2236 = vld [vmem:[#allocation10 + $0xa0] sm:$0xf]
    %v2237 = vld [vmem:[#allocation10 + $0xa4] sm:$0xf]
    %v2238 = vld [vmem:[#allocation10 + $0xa8] sm:$0xf]
    %v2239 = vld [vmem:[#allocation10 + $0xac] sm:$0xf]
    %v2240 = vld [vmem:[#allocation10 + $0xb0] sm:$0xf]
    %v2241 = vld [vmem:[#allocation10 + $0xb4] sm:$0xf]
    %v2242 = vld [vmem:[#allocation10 + $0xb8] sm:$0xf]
    %v2243 = vld [vmem:[#allocation10 + $0xbc] sm:$0xf]
    %v2244 = vld [vmem:[#allocation10 + $0xc0] sm:$0xf]
    %v2245 = vld [vmem:[#allocation10 + $0xc4] sm:$0xf]
    %v2246 = vld [vmem:[#allocation10 + $0xc8] sm:$0xf]
    %v2247 = vld [vmem:[#allocation10 + $0xcc] sm:$0xf]
    %v2248 = vld [vmem:[#allocation10 + $0xd0] sm:$0xf]
    %v2249 = vld [vmem:[#allocation10 + $0xd4] sm:$0xf]
    %v2250 = vld [vmem:[#allocation10 + $0xd8] sm:$0xf]
    %v2251 = vld [vmem:[#allocation10 + $0xdc] sm:$0xf]
    %v2252 = vld [vmem:[#allocation10 + $0xe0] sm:$0xf]
    %v2253 = vld [vmem:[#allocation10 + $0xe4] sm:$0xf]
    %v2254 = vld [vmem:[#allocation10 + $0xe8] sm:$0xf]
    %v2255 = vld [vmem:[#allocation10 + $0xec] sm:$0xf]
    %v2256 = vld [vmem:[#allocation10 + $0xf0] sm:$0xf]
    %v2257 = vld [vmem:[#allocation10 + $0xf4] sm:$0xf]
    %v2258 = vld [vmem:[#allocation10 + $0xf8] sm:$0xf]
    %v2259 = vld [vmem:[#allocation10 + $0xfc] sm:$0xf]
    %v2260 = vld [vmem:[#allocation10 + $0x100] sm:$0xf]
    %v2261 = vld [vmem:[#allocation10 + $0x104] sm:$0xf]
    %v2262 = vld [vmem:[#allocation10 + $0x108] sm:$0xf]
    %v2263 = vld [vmem:[#allocation10 + $0x10c] sm:$0xf]
    %v2264 = vld [vmem:[#allocation10 + $0x110] sm:$0xf]
    %v2265 = vld [vmem:[#allocation10 + $0x114] sm:$0xf]
    %v2266 = vld [vmem:[#allocation10 + $0x118] sm:$0xf]
    %v2267 = vld [vmem:[#allocation10 + $0x11c] sm:$0xf]
    %v2268 = vld [vmem:[#allocation10 + $0x120] sm:$0xf]
    %v2269 = vld [vmem:[#allocation10 + $0x124] sm:$0xf]
    %v2270 = vld [vmem:[#allocation10 + $0x128] sm:$0xf]
    %v2271 = vld [vmem:[#allocation10 + $0x12c] sm:$0xf]
    %v2272 = vld [vmem:[#allocation10 + $0x130] sm:$0xf]
    %v2273 = vld [vmem:[#allocation10 + $0x134] sm:$0xf]
    %v2274 = vld [vmem:[#allocation10 + $0x138] sm:$0xf]
    %v2275 = vld [vmem:[#allocation10 + $0x13c] sm:$0xf]
    %v2276 = vld [vmem:[#allocation10 + $0x140] sm:$0xf]
    %v2277 = vld [vmem:[#allocation10 + $0x144] sm:$0xf]
    %v2278 = vld [vmem:[#allocation10 + $0x148] sm:$0xf]
    %v2279 = vld [vmem:[#allocation10 + $0x14c] sm:$0xf]
    %v2280 = vld [vmem:[#allocation10 + $0x150] sm:$0xf]
    %v2281 = vld [vmem:[#allocation10 + $0x154] sm:$0xf]
    %v2282 = vld [vmem:[#allocation10 + $0x158] sm:$0xf]
    %v2283 = vld [vmem:[#allocation10 + $0x15c] sm:$0xf]
    %v2284 = vld [vmem:[#allocation10 + $0x160] sm:$0xf]
    %v2285 = vld [vmem:[#allocation10 + $0x164] sm:$0xf]
    %v2286 = vld [vmem:[#allocation10 + $0x168] sm:$0xf]
    %v2287 = vld [vmem:[#allocation10 + $0x16c] sm:$0xf]
    %v2288 = vld [vmem:[#allocation10 + $0x170] sm:$0xf]
    %v2289 = vld [vmem:[#allocation10 + $0x174] sm:$0xf]
    %v2290 = vld [vmem:[#allocation10 + $0x178] sm:$0xf]
    %v2291 = vld [vmem:[#allocation10 + $0x17c] sm:$0xf]
    %v2292 = vld [vmem:[#allocation10 + $0x180] sm:$0xf]
    %v2293 = vld [vmem:[#allocation10 + $0x184] sm:$0xf]
    %v2294 = vld [vmem:[#allocation10 + $0x188] sm:$0xf]
    %v2295 = vld [vmem:[#allocation10 + $0x18c] sm:$0xf]
    %v2296 = vld [vmem:[#allocation10 + $0x190] sm:$0xf]
    %v2297 = vld [vmem:[#allocation10 + $0x194] sm:$0xf]
    %v2298 = vld [vmem:[#allocation10 + $0x198] sm:$0xf]
    %v2299 = vld [vmem:[#allocation10 + $0x19c] sm:$0xf]
    %v2300 = vld [vmem:[#allocation10 + $0x1a0] sm:$0xf]
    %v2301 = vld [vmem:[#allocation10 + $0x1a4] sm:$0xf]
    %v2302 = vld [vmem:[#allocation10 + $0x1a8] sm:$0xf]
    %v2303 = vld [vmem:[#allocation10 + $0x1ac] sm:$0xf]
    %v2304 = vld [vmem:[#allocation10 + $0x1b0] sm:$0xf]
    %v2305 = vld [vmem:[#allocation10 + $0x1b4] sm:$0xf]
    %v2306 = vld [vmem:[#allocation10 + $0x1b8] sm:$0xf]
    %v2307 = vld [vmem:[#allocation10 + $0x1bc] sm:$0xf]
    %v2308 = vld [vmem:[#allocation10 + $0x1c0] sm:$0xf]
    %v2309 = vld [vmem:[#allocation10 + $0x1c4] sm:$0xf]
    %v2310 = vld [vmem:[#allocation10 + $0x1c8] sm:$0xf]
    %v2311 = vld [vmem:[#allocation10 + $0x1cc] sm:$0xf]
    %v2312 = vld [vmem:[#allocation10 + $0x1d0] sm:$0xf]
    %v2313 = vld [vmem:[#allocation10 + $0x1d4] sm:$0xf]
    %v2314 = vld [vmem:[#allocation10 + $0x1d8] sm:$0xf]
    %v2315 = vld [vmem:[#allocation10 + $0x1dc] sm:$0xf]
    %v2316 = vld [vmem:[#allocation10 + $0x1e0] sm:$0xf]
    %v2317 = vld [vmem:[#allocation10 + $0x1e4] sm:$0xf]
    %v2318 = vld [vmem:[#allocation10 + $0x1e8] sm:$0xf]
    %v2319 = vld [vmem:[#allocation10 + $0x1ec] sm:$0xf]
    %v2320 = vld [vmem:[#allocation10 + $0x1f0] sm:$0xf]
    %v2321 = vld [vmem:[#allocation10 + $0x1f4] sm:$0xf]
    %v2322 = vld [vmem:[#allocation10 + $0x1f8] sm:$0xf]
    %v2323 = vld [vmem:[#allocation10 + $0x1fc] sm:$0xf]
    %s2324 = sld [smem:[#allocation2 + $0x4]]
    %v2325 = vstv %s2324
    %v2454 = vunpack.c.l.b16 %v2196
    %v2455 = vunpack.c.l.b16 %v2197
    %v2456 = vunpack.c.l.b16 %v2198
    %v2457 = vunpack.c.l.b16 %v2199
    %v2458 = vunpack.c.l.b16 %v2200
    %v2459 = vunpack.c.l.b16 %v2201
    %v2460 = vunpack.c.l.b16 %v2202
    %v2461 = vunpack.c.l.b16 %v2203
    %v2462 = vunpack.c.l.b16 %v2204
    %v2463 = vunpack.c.l.b16 %v2205
    %v2464 = vunpack.c.l.b16 %v2206
    %v2465 = vunpack.c.l.b16 %v2207
    %v2466 = vunpack.c.l.b16 %v2208
    %v2467 = vunpack.c.l.b16 %v2209
    %v2468 = vunpack.c.l.b16 %v2210
    %v2469 = vunpack.c.l.b16 %v2211
    %v2470 = vunpack.c.l.b16 %v2212
    %v2471 = vunpack.c.l.b16 %v2213
    %v2472 = vunpack.c.l.b16 %v2214
    %v2473 = vunpack.c.l.b16 %v2215
    %v2474 = vunpack.c.l.b16 %v2216
    %v2475 = vunpack.c.l.b16 %v2217
    %v2476 = vunpack.c.l.b16 %v2218
    %v2477 = vunpack.c.l.b16 %v2219
    %v2478 = vunpack.c.l.b16 %v2220
    %v2479 = vunpack.c.l.b16 %v2221
    %v2480 = vunpack.c.l.b16 %v2222
    %v2481 = vunpack.c.l.b16 %v2223
    %v2482 = vunpack.c.l.b16 %v2224
    %v2483 = vunpack.c.l.b16 %v2225
    %v2484 = vunpack.c.l.b16 %v2226
    %v2485 = vunpack.c.l.b16 %v2227
    %v2486 = vunpack.c.l.b16 %v2228
    %v2487 = vunpack.c.l.b16 %v2229
    %v2488 = vunpack.c.l.b16 %v2230
    %v2489 = vunpack.c.l.b16 %v2231
    %v2490 = vunpack.c.l.b16 %v2232
    %v2491 = vunpack.c.l.b16 %v2233
    %v2492 = vunpack.c.l.b16 %v2234
    %v2493 = vunpack.c.l.b16 %v2235
    %v2494 = vunpack.c.l.b16 %v2236
    %v2495 = vunpack.c.l.b16 %v2237
    %v2496 = vunpack.c.l.b16 %v2238
    %v2497 = vunpack.c.l.b16 %v2239
    %v2498 = vunpack.c.l.b16 %v2240
    %v2499 = vunpack.c.l.b16 %v2241
    %v2500 = vunpack.c.l.b16 %v2242
    %v2501 = vunpack.c.l.b16 %v2243
    %v2502 = vunpack.c.l.b16 %v2244
    %v2503 = vunpack.c.l.b16 %v2245
    %v2504 = vunpack.c.l.b16 %v2246
    %v2505 = vunpack.c.l.b16 %v2247
    %v2506 = vunpack.c.l.b16 %v2248
    %v2507 = vunpack.c.l.b16 %v2249
    %v2508 = vunpack.c.l.b16 %v2250
    %v2509 = vunpack.c.l.b16 %v2251
    %v2510 = vunpack.c.l.b16 %v2252
    %v2511 = vunpack.c.l.b16 %v2253
    %v2512 = vunpack.c.l.b16 %v2254
    %v2513 = vunpack.c.l.b16 %v2255
    %v2514 = vunpack.c.l.b16 %v2256
    %v2515 = vunpack.c.l.b16 %v2257
    %v2516 = vunpack.c.l.b16 %v2258
    %v2517 = vunpack.c.l.b16 %v2259
    %v2518 = vunpack.c.l.b16 %v2260
    %v2519 = vunpack.c.l.b16 %v2261
    %v2520 = vunpack.c.l.b16 %v2262
    %v2521 = vunpack.c.l.b16 %v2263
    %v2522 = vunpack.c.l.b16 %v2264
    %v2523 = vunpack.c.l.b16 %v2265
    %v2524 = vunpack.c.l.b16 %v2266
    %v2525 = vunpack.c.l.b16 %v2267
    %v2526 = vunpack.c.l.b16 %v2268
    %v2527 = vunpack.c.l.b16 %v2269
    %v2528 = vunpack.c.l.b16 %v2270
    %v2529 = vunpack.c.l.b16 %v2271
    %v2530 = vunpack.c.l.b16 %v2272
    %v2531 = vunpack.c.l.b16 %v2273
    %v2532 = vunpack.c.l.b16 %v2274
    %v2533 = vunpack.c.l.b16 %v2275
    %v2534 = vunpack.c.l.b16 %v2276
    %v2535 = vunpack.c.l.b16 %v2277
    %v2536 = vunpack.c.l.b16 %v2278
    %v2537 = vunpack.c.l.b16 %v2279
    %v2538 = vunpack.c.l.b16 %v2280
    %v2539 = vunpack.c.l.b16 %v2281
    %v2540 = vunpack.c.l.b16 %v2282
    %v2541 = vunpack.c.l.b16 %v2283
    %v2542 = vunpack.c.l.b16 %v2284
    %v2543 = vunpack.c.l.b16 %v2285
    %v2544 = vunpack.c.l.b16 %v2286
    %v2545 = vunpack.c.l.b16 %v2287
    %v2546 = vunpack.c.l.b16 %v2288
    %v2547 = vunpack.c.l.b16 %v2289
    %v2548 = vunpack.c.l.b16 %v2290
    %v2549 = vunpack.c.l.b16 %v2291
    %v2550 = vunpack.c.l.b16 %v2292
    %v2551 = vunpack.c.l.b16 %v2293
    %v2552 = vunpack.c.l.b16 %v2294
    %v2553 = vunpack.c.l.b16 %v2295
    %v2554 = vunpack.c.l.b16 %v2296
    %v2555 = vunpack.c.l.b16 %v2297
    %v2556 = vunpack.c.l.b16 %v2298
    %v2557 = vunpack.c.l.b16 %v2299
    %v2558 = vunpack.c.l.b16 %v2300
    %v2559 = vunpack.c.l.b16 %v2301
    %v2560 = vunpack.c.l.b16 %v2302
    %v2561 = vunpack.c.l.b16 %v2303
    %v2562 = vunpack.c.l.b16 %v2304
    %v2563 = vunpack.c.l.b16 %v2305
    %v2564 = vunpack.c.l.b16 %v2306
    %v2565 = vunpack.c.l.b16 %v2307
    %v2566 = vunpack.c.l.b16 %v2308
    %v2567 = vunpack.c.l.b16 %v2309
    %v2568 = vunpack.c.l.b16 %v2310
    %v2569 = vunpack.c.l.b16 %v2311
    %v2570 = vunpack.c.l.b16 %v2312
    %v2571 = vunpack.c.l.b16 %v2313
    %v2572 = vunpack.c.l.b16 %v2314
    %v2573 = vunpack.c.l.b16 %v2315
    %v2574 = vunpack.c.l.b16 %v2316
    %v2575 = vunpack.c.l.b16 %v2317
    %v2576 = vunpack.c.l.b16 %v2318
    %v2577 = vunpack.c.l.b16 %v2319
    %v2578 = vunpack.c.l.b16 %v2320
    %v2579 = vunpack.c.l.b16 %v2321
    %v2580 = vunpack.c.l.b16 %v2322
    %v2581 = vunpack.c.l.b16 %v2323
    %v2582 = vpack.c.b16 %v2455, %v2454
    %v2583 = vpack.c.b16 %v2457, %v2456
    %v2584 = vpack.c.b16 %v2459, %v2458
    %v2585 = vpack.c.b16 %v2461, %v2460
    %v2586 = vpack.c.b16 %v2463, %v2462
    %v2587 = vpack.c.b16 %v2465, %v2464
    %v2588 = vpack.c.b16 %v2467, %v2466
    %v2589 = vpack.c.b16 %v2469, %v2468
    %v2590 = vpack.c.b16 %v2471, %v2470
    %v2591 = vpack.c.b16 %v2473, %v2472
    %v2592 = vpack.c.b16 %v2475, %v2474
    %v2593 = vpack.c.b16 %v2477, %v2476
    %v2594 = vpack.c.b16 %v2479, %v2478
    %v2595 = vpack.c.b16 %v2481, %v2480
    %v2596 = vpack.c.b16 %v2483, %v2482
    %v2597 = vpack.c.b16 %v2485, %v2484
    %v2598 = vpack.c.b16 %v2487, %v2486
    %v2599 = vpack.c.b16 %v2489, %v2488
    %v2600 = vpack.c.b16 %v2491, %v2490
    %v2601 = vpack.c.b16 %v2493, %v2492
    %v2602 = vpack.c.b16 %v2495, %v2494
    %v2603 = vpack.c.b16 %v2497, %v2496
    %v2604 = vpack.c.b16 %v2499, %v2498
    %v2605 = vpack.c.b16 %v2501, %v2500
    %v2606 = vpack.c.b16 %v2503, %v2502
    %v2607 = vpack.c.b16 %v2505, %v2504
    %v2608 = vpack.c.b16 %v2507, %v2506
    %v2609 = vpack.c.b16 %v2509, %v2508
    %v2610 = vpack.c.b16 %v2511, %v2510
    %v2611 = vpack.c.b16 %v2513, %v2512
    %v2612 = vpack.c.b16 %v2515, %v2514
    %v2613 = vpack.c.b16 %v2517, %v2516
    %v2614 = vpack.c.b16 %v2519, %v2518
    %v2615 = vpack.c.b16 %v2521, %v2520
    %v2616 = vpack.c.b16 %v2523, %v2522
    %v2617 = vpack.c.b16 %v2525, %v2524
    %v2618 = vpack.c.b16 %v2527, %v2526
    %v2619 = vpack.c.b16 %v2529, %v2528
    %v2620 = vpack.c.b16 %v2531, %v2530
    %v2621 = vpack.c.b16 %v2533, %v2532
    %v2622 = vpack.c.b16 %v2535, %v2534
    %v2623 = vpack.c.b16 %v2537, %v2536
    %v2624 = vpack.c.b16 %v2539, %v2538
    %v2625 = vpack.c.b16 %v2541, %v2540
    %v2626 = vpack.c.b16 %v2543, %v2542
    %v2627 = vpack.c.b16 %v2545, %v2544
    %v2628 = vpack.c.b16 %v2547, %v2546
    %v2629 = vpack.c.b16 %v2549, %v2548
    %v2630 = vpack.c.b16 %v2551, %v2550
    %v2631 = vpack.c.b16 %v2553, %v2552
    %v2632 = vpack.c.b16 %v2555, %v2554
    %v2633 = vpack.c.b16 %v2557, %v2556
    %v2634 = vpack.c.b16 %v2559, %v2558
    %v2635 = vpack.c.b16 %v2561, %v2560
    %v2636 = vpack.c.b16 %v2563, %v2562
    %v2637 = vpack.c.b16 %v2565, %v2564
    %v2638 = vpack.c.b16 %v2567, %v2566
    %v2639 = vpack.c.b16 %v2569, %v2568
    %v2640 = vpack.c.b16 %v2571, %v2570
    %v2641 = vpack.c.b16 %v2573, %v2572
    %v2642 = vpack.c.b16 %v2575, %v2574
    %v2643 = vpack.c.b16 %v2577, %v2576
    %v2644 = vpack.c.b16 %v2579, %v2578
    %v2645 = vpack.c.b16 %v2581, %v2580
    %2710 = vmatprep.subr.bf16.mxu0 0
    %2711 = vmatpush1.bf16.msra.mxu0 %v2589
    %2712 = vmatprep.subr.bf16.mxu0 0
    %2713 = vmatpush1.bf16.msra.mxu0 %v2588
    %2714 = vmatprep.subr.bf16.mxu0 0
    %2715 = vmatpush1.bf16.msra.mxu0 %v2587
    %2716 = vmatprep.subr.bf16.mxu0 0
    %2717 = vmatpush1.bf16.msra.mxu0 %v2586
    %2718 = vmatprep.subr.bf16.mxu0 0
    %2719 = vmatpush1.bf16.msra.mxu0 %v2585
    %2720 = vmatprep.subr.bf16.mxu0 0
    %2721 = vmatpush1.bf16.msra.mxu0 %v2584
    %2722 = vmatprep.subr.bf16.mxu0 0
    %2723 = vmatpush1.bf16.msra.mxu0 %v2583
    %2724 = vmatprep.subr.bf16.mxu0 0
    %2725 = vmatpush1.bf16.msra.mxu0 %v2582
    %2726 = vmatprep.subr.bf16.mxu0 0
    %2727 = vmatpush2.bf16.msra.mxu0 %v2597
    %2728 = vmatprep.subr.bf16.mxu0 0
    %2729 = vmatpush2.bf16.msra.mxu0 %v2596
    %2730 = vmatprep.subr.bf16.mxu0 0
    %2731 = vmatpush2.bf16.msra.mxu0 %v2595
    %2732 = vmatprep.subr.bf16.mxu0 0
    %2733 = vmatpush2.bf16.msra.mxu0 %v2594
    %2734 = vmatprep.subr.bf16.mxu0 0
    %2735 = vmatpush2.bf16.msra.mxu0 %v2593
    %2736 = vmatprep.subr.bf16.mxu0 0
    %2737 = vmatpush2.bf16.msra.mxu0 %v2592
    %2738 = vmatprep.subr.bf16.mxu0 0
    %2739 = vmatpush2.bf16.msra.mxu0 %v2591
    %2740 = vmatprep.subr.bf16.mxu0 0
    %2741 = vmatpush2.bf16.msra.mxu0 %v2590
    %2742 = vmatprep.mubr.bf16.mxu0 %v2189
    %2743 = vmatmul.mubr.bf16.gmra.mxu0 %v2188
    %v2744 = vpop.f32.mrf.mxu0
    %v2745 = vadd.f32 %v2325, %v2744
    %v2746 = vpop.f32.mrf.mxu0
    %v2747 = vpop.f32.mrf.mxu0
    %v2748 = vpop.f32.mrf.mxu0
    %2749 = vdwg.mxu0
    %2750 = vmatprep.subr.bf16.mxu0 0
    %2751 = vmatpush1.bf16.msra.mxu0 %v2605
    %2752 = vmatprep.subr.bf16.mxu0 0
    %2753 = vmatpush1.bf16.msra.mxu0 %v2604
    %2754 = vmatprep.subr.bf16.mxu0 0
    %2755 = vmatpush1.bf16.msra.mxu0 %v2603
    %2756 = vmatprep.subr.bf16.mxu0 0
    %2757 = vmatpush1.bf16.msra.mxu0 %v2602
    %2758 = vmatprep.subr.bf16.mxu0 0
    %2759 = vmatpush1.bf16.msra.mxu0 %v2601
    %2760 = vmatprep.subr.bf16.mxu0 0
    %2761 = vmatpush1.bf16.msra.mxu0 %v2600
    %2762 = vmatprep.subr.bf16.mxu0 0
    %2763 = vmatpush1.bf16.msra.mxu0 %v2599
    %2764 = vmatprep.subr.bf16.mxu0 0
    %2765 = vmatpush1.bf16.msra.mxu0 %v2598
    %2766 = vmatprep.subr.bf16.mxu0 0
    %2767 = vmatpush2.bf16.msra.mxu0 %v2613
    %2768 = vmatprep.subr.bf16.mxu0 0
    %2769 = vmatpush2.bf16.msra.mxu0 %v2612
    %2770 = vmatprep.subr.bf16.mxu0 0
    %2771 = vmatpush2.bf16.msra.mxu0 %v2611
    %2772 = vmatprep.subr.bf16.mxu0 0
    %2773 = vmatpush2.bf16.msra.mxu0 %v2610
    %2774 = vmatprep.subr.bf16.mxu0 0
    %2775 = vmatpush2.bf16.msra.mxu0 %v2609
    %2776 = vmatprep.subr.bf16.mxu0 0
    %2777 = vmatpush2.bf16.msra.mxu0 %v2608
    %2778 = vmatprep.subr.bf16.mxu0 0
    %2779 = vmatpush2.bf16.msra.mxu0 %v2607
    %2780 = vmatprep.subr.bf16.mxu0 0
    %2781 = vmatpush2.bf16.msra.mxu0 %v2606
    %2782 = vmatprep.mubr.bf16.mxu0 %v2191
    %2783 = vmatmul.mubr.bf16.gmra.mxu0 %v2190
    %v2784 = vpop.f32.mrf.mxu0
    %v2785 = vadd.f32 %v2745, %v2784
    %v2786 = vpop.f32.mrf.mxu0
    %v2787 = vpop.f32.mrf.mxu0
    %v2788 = vpop.f32.mrf.mxu0
    %2789 = vdwg.mxu0
    %2790 = vmatprep.subr.bf16.mxu0 0
    %2791 = vmatpush1.bf16.msra.mxu0 %v2621
    %2792 = vmatprep.subr.bf16.mxu0 0
    %2793 = vmatpush1.bf16.msra.mxu0 %v2620
    %2794 = vmatprep.subr.bf16.mxu0 0
    %2795 = vmatpush1.bf16.msra.mxu0 %v2619
    %2796 = vmatprep.subr.bf16.mxu0 0
    %2797 = vmatpush1.bf16.msra.mxu0 %v2618
    %2798 = vmatprep.subr.bf16.mxu0 0
    %2799 = vmatpush1.bf16.msra.mxu0 %v2617
    %2800 = vmatprep.subr.bf16.mxu0 0
    %2801 = vmatpush1.bf16.msra.mxu0 %v2616
    %2802 = vmatprep.subr.bf16.mxu0 0
    %2803 = vmatpush1.bf16.msra.mxu0 %v2615
    %2804 = vmatprep.subr.bf16.mxu0 0
    %2805 = vmatpush1.bf16.msra.mxu0 %v2614
    %2806 = vmatprep.subr.bf16.mxu0 0
    %2807 = vmatpush2.bf16.msra.mxu0 %v2629
    %2808 = vmatprep.subr.bf16.mxu0 0
    %2809 = vmatpush2.bf16.msra.mxu0 %v2628
    %2810 = vmatprep.subr.bf16.mxu0 0
    %2811 = vmatpush2.bf16.msra.mxu0 %v2627
    %2812 = vmatprep.subr.bf16.mxu0 0
    %2813 = vmatpush2.bf16.msra.mxu0 %v2626
    %2814 = vmatprep.subr.bf16.mxu0 0
    %2815 = vmatpush2.bf16.msra.mxu0 %v2625
    %2816 = vmatprep.subr.bf16.mxu0 0
    %2817 = vmatpush2.bf16.msra.mxu0 %v2624
    %2818 = vmatprep.subr.bf16.mxu0 0
    %2819 = vmatpush2.bf16.msra.mxu0 %v2623
    %2820 = vmatprep.subr.bf16.mxu0 0
    %2821 = vmatpush2.bf16.msra.mxu0 %v2622
    %2822 = vmatprep.mubr.bf16.mxu0 %v2193
    %2823 = vmatmul.mubr.bf16.gmra.mxu0 %v2192
    %v2824 = vpop.f32.mrf.mxu0
    %v2825 = vadd.f32 %v2785, %v2824
    %v2826 = vpop.f32.mrf.mxu0
    %v2827 = vpop.f32.mrf.mxu0
    %v2828 = vpop.f32.mrf.mxu0
    %2829 = vdwg.mxu0
    %2830 = vmatprep.subr.bf16.mxu0 0
    %2831 = vmatpush1.bf16.msra.mxu0 %v2637
    %2832 = vmatprep.subr.bf16.mxu0 0
    %2833 = vmatpush1.bf16.msra.mxu0 %v2636
    %2834 = vmatprep.subr.bf16.mxu0 0
    %2835 = vmatpush1.bf16.msra.mxu0 %v2635
    %2836 = vmatprep.subr.bf16.mxu0 0
    %2837 = vmatpush1.bf16.msra.mxu0 %v2634
    %2838 = vmatprep.subr.bf16.mxu0 0
    %2839 = vmatpush1.bf16.msra.mxu0 %v2633
    %2840 = vmatprep.subr.bf16.mxu0 0
    %2841 = vmatpush1.bf16.msra.mxu0 %v2632
    %2842 = vmatprep.subr.bf16.mxu0 0
    %2843 = vmatpush1.bf16.msra.mxu0 %v2631
    %2844 = vmatprep.subr.bf16.mxu0 0
    %2845 = vmatpush1.bf16.msra.mxu0 %v2630
    %2846 = vmatprep.subr.bf16.mxu0 0
    %2847 = vmatpush2.bf16.msra.mxu0 %v2645
    %2848 = vmatprep.subr.bf16.mxu0 0
    %2849 = vmatpush2.bf16.msra.mxu0 %v2644
    %2850 = vmatprep.subr.bf16.mxu0 0
    %2851 = vmatpush2.bf16.msra.mxu0 %v2643
    %2852 = vmatprep.subr.bf16.mxu0 0
    %2853 = vmatpush2.bf16.msra.mxu0 %v2642
    %2854 = vmatprep.subr.bf16.mxu0 0
    %2855 = vmatpush2.bf16.msra.mxu0 %v2641
    %2856 = vmatprep.subr.bf16.mxu0 0
    %2857 = vmatpush2.bf16.msra.mxu0 %v2640
    %2858 = vmatprep.subr.bf16.mxu0 0
    %2859 = vmatpush2.bf16.msra.mxu0 %v2639
    %2860 = vmatprep.subr.bf16.mxu0 0
    %2861 = vmatpush2.bf16.msra.mxu0 %v2638
    %2862 = vmatprep.mubr.bf16.mxu0 %v2195
    %2863 = vmatmul.mubr.bf16.gmra.mxu0 %v2194
    %v2864 = vpop.f32.mrf.mxu0
    %v2865 = vadd.f32 %v2825, %v2864
    %v2866 = vpop.f32.mrf.mxu0
    %v2867 = vpop.f32.mrf.mxu0
    %v2868 = vpop.f32.mrf.mxu0
    %2869 = vdwg.mxu0
    %2870 = vst [vmem:[#allocation12] sm:$0xff] %v2865
    // Predicated region
    $region58: #{autoencoder1d_forward.1} parent=1 // pred_check
      _
    $region59: #{autoencoder1d_forward.1} parent=1 // pred_check_branch
      %2872 = sbr.rel (0) target = $region61
    $region60: #{autoencoder1d_forward.1} parent=1 // pred_region
      _
    $region61: #{autoencoder1d_forward.1} parent=1 // pred_fallthru
      _
    // Predicated region
    $region62: #{autoencoder1d_forward.1} parent=1 // pred_check
      _
    $region63: #{autoencoder1d_forward.1} parent=1 // pred_check_branch
      %2874 = sbr.rel (0) target = $region65
    $region64: #{autoencoder1d_forward.1} parent=1 // pred_region
      %s2876 = ssub.s32 128, 128
      %2877 = vsyncadd [#allocation4], %s2876
      %s2879 = sshll.u32 [#allocation12], 4
      %s2880 = int_to_ptr.vmem [resolvable:$true] %s2879
      %2882 = dma.vmem_to_hbm [thread:$0]  %s2880, 128, %s10, [#allocation4]
    $region65: #{autoencoder1d_forward.1} parent=1 // pred_fallthru
      _
    // Predicated region
    $region66: #{autoencoder1d_forward.1} parent=1 // pred_check
      _
    $region67: #{autoencoder1d_forward.1} parent=1 // pred_check_branch
      %2884 = sbr.rel (0) target = $region69
    $region68: #{autoencoder1d_forward.1} parent=1 // pred_region
      _
    $region69: #{autoencoder1d_forward.1} parent=1 // pred_fallthru
      _
    // Predicated region
    $region70: #{autoencoder1d_forward.1} parent=1 // pred_check
      _
    $region71: #{autoencoder1d_forward.1} parent=1 // pred_check_branch
      %2886 = sbr.rel (0) target = $region73
    $region72: #{autoencoder1d_forward.1} parent=1 // pred_region
      %2887 = dma.done [#allocation4], 128
    $region73: #{autoencoder1d_forward.1} parent=1 // pred_fallthru
      _
    %2888 = vsyncpa [#allocation3], 1
    %2889 = vsyncpa [#allocation8], 1
    %2890 = vsyncpa [#allocation11], 1
    %2891 = vsyncpa [#allocation4], 1
    %2892 = vsyncpa [#allocation5], 1

</llo_original>
